<compile_context>
chip_gen: v6e
topology: v6e:2x2x1
jax: 0.10.0
libtpu: 0.0.40
codegen_flags: <defaults>
</compile_context>

<pallas_src>
import math

import jax
import jax.numpy as jnp
from jax import lax
from jax.experimental import pallas as pl
from jax.experimental.pallas import tpu as pltpu


_B_TILE_MAX = 256   # batch rows per grid tile (parallel axis -> megacore on v7x)
_T_CHUNK_MAX = 32   # timesteps per grid chunk (bounds VMEM, pipelines x DMA)
_UNROLL = 8         # bounded unroll of the in-chunk recurrence


def _round_up(n, m):
    return ((n + m - 1) // m) * m


def _nbytes(shape, dtype):
    n = 1
    for d in shape:
        n *= int(d)
    return n * jnp.dtype(dtype).itemsize


def _build_kernel(*, T_c, B_t, E_pad, GS, HP4, T_total, T_pad):
    compact = GS < 128   # all four gates packed into ceil(4H/128)*128 lanes

    def kernel(x_ref, w_ih_ref, w_hh_ref, b_ref, w_out_ref, b_out_ref,
               out_ref, h_scr, c_scr, xg_scr):
        t_chunk = pl.program_id(1)

        # ---- new batch tile: reset recurrent state ----
        @pl.when(t_chunk == 0)
        def _():
            h_scr[...] = jnp.zeros_like(h_scr)
            c_scr[...] = jnp.zeros_like(c_scr)

        # ---- Phase 1: input projection for the whole chunk (one MXU matmul) ----
        x = x_ref[...]                                            # (T_c, B_t, E_pad)
        xg = jnp.dot(x.reshape(T_c * B_t, E_pad), w_ih_ref[...],
                     preferred_element_type=jnp.float32)          # (T_c*B_t, HP4) f32
        xg_scr[...] = xg.reshape(T_c, B_t, HP4).astype(xg_scr.dtype)

        b_row = b_ref[...]                                        # (1, HP4) f32 (exact)
        if compact:
            lane = lax.broadcasted_iota(jnp.int32, (B_t, HP4), 1)
            g_gate_sel = jnp.logical_and(lane >= 2 * GS, lane < 3 * GS)

        # ---- Phase 2: recurrence (only h @ W_hh + elementwise on critical path) ----
        def step(t, carry):
            h, c = carry
            gates = (xg_scr[t].astype(jnp.float32)
                     + jnp.dot(h.astype(w_hh_ref.dtype), w_hh_ref[...],
                               preferred_element_type=jnp.float32)
                     + b_row)                                     # (B_t, HP4) f32
            if compact:
                # Two full-width EUP passes + a VPU select instead of four
                # per-gate passes over lane-padded gates (H < 128 regime).
                sig = jax.nn.sigmoid(gates)
                tnh = jnp.tanh(gates)
                act = jnp.where(g_gate_sel, tnh, sig)
                ig = act[:, 0 * GS:1 * GS]
                fg = act[:, 1 * GS:2 * GS]
                gg = act[:, 2 * GS:3 * GS]
                og = act[:, 3 * GS:4 * GS]
            else:
                ig = jax.nn.sigmoid(gates[:, 0 * GS:1 * GS])
                fg = jax.nn.sigmoid(gates[:, 1 * GS:2 * GS])
                gg = jnp.tanh(gates[:, 2 * GS:3 * GS])
                og = jax.nn.sigmoid(gates[:, 3 * GS:4 * GS])
            c_new = fg * c + ig * gg
            h_new = og * jnp.tanh(c_new)
            if T_pad != T_total:   # only traced when the time axis was padded
                valid = (t_chunk * T_c + t) < T_total
                h_new = jnp.where(valid, h_new, h)
                c_new = jnp.where(valid, c_new, c)
            return h_new, c_new

        h, c = lax.fori_loop(0, T_c, step, (h_scr[...], c_scr[...]),
                             unroll=min(T_c, _UNROLL))
        h_scr[...] = h
        c_scr[...] = c

        # ---- Phase 3: hidden2label + log_softmax on the last chunk only ----
        @pl.when(t_chunk == pl.num_programs(1) - 1)
        def _():
            # Padded label lanes carry a -1e30 *float32* bias -> exp underflows
            # to 0, so log_softmax is exact over the real labels.
            y = (jnp.dot(h.astype(w_out_ref.dtype), w_out_ref[...],
                         preferred_element_type=jnp.float32) + b_out_ref[...])
            m = jnp.max(y, axis=-1, keepdims=True)
            lse = m + jnp.log(jnp.sum(jnp.exp(y - m), axis=-1, keepdims=True))
            out_ref[...] = (y - lse).astype(out_ref.dtype)

    return kernel


def lstm_classifier_forward(sentence, params):
    """sentence: (seq_len, batch) int32 token ids. Returns (batch, label_size) f32 log-probs."""
    emb = params["embedding"]          # (V, E_pad)   compute dtype
    w_ih_t = params["w_ih_t"]          # (E_pad, HP4) compute dtype, gate-packed
    w_hh_t = params["w_hh_t"]          # (GS, HP4)    compute dtype, gate-packed
    b = params["b"]                    # (1, HP4)     f32 (b_ih + b_hh)
    w_out_t = params["w_out_t"]        # (GS, L_pad)  compute dtype
    b_out = params["b_out"]            # (1, L_pad)   f32 (-1e30 pad bias; MUST stay f32)
    GS = params["gate_stride"]
    L = params["label_size"]
    assert b.dtype == jnp.float32 and b_out.dtype == jnp.float32, \
        "biases (incl. -1e30 label pad) must stay float32"

    T, B = sentence.shape
    E_pad, HP4 = w_ih_t.shape
    L_pad = w_out_t.shape[1]
    cd = w_ih_t.dtype

    # Batch tiling: pad to a sublane multiple, split into parallel tiles.
    B_pad = _round_up(max(B, 8), 8)
    if B_pad > _B_TILE_MAX:
        B_pad = _round_up(B_pad, _B_TILE_MAX)
        B_t = _B_TILE_MAX
    else:
        B_t = B_pad
    n_b = B_pad // B_t

    # Time chunking: bounds VMEM independent of seq_len, overlaps x DMA with compute.
    T_c = min(T, _T_CHUNK_MAX)
    T_pad = _round_up(T, T_c)
    n_t = T_pad // T_c

    # Embedding gather is wrapper glue (plain XLA); feature dim already lane-padded.
    # TODO(synk): fuse the embedding gather into the kernel (scalar-prefetch row gather)
    # to avoid one (T, B, E_pad) HBM round trip on long sequences (biggest win on v5e).
    x = jnp.take(emb, sentence, axis=0)                     # (T, B, E_pad), compute dtype
    if T_pad != T or B_pad != B:
        x = jnp.pad(x, ((0, T_pad - T), (0, B_pad - B), (0, 0)))   # zeros; masked in-kernel

    kernel = _build_kernel(T_c=T_c, B_t=B_t, E_pad=E_pad, GS=GS, HP4=HP4,
                           T_total=T, T_pad=T_pad)

    # Size the scoped VMEM limit from what the kernel actually keeps resident
    # (defaults are only 16/32 MiB, well below physical 128/128/64 MiB).
    est = (2 * _nbytes((T_c, B_t, E_pad), cd)                          # double-buffered x
           + 2 * sum(_nbytes(a.shape, a.dtype)
                     for a in (w_ih_t, w_hh_t, b, w_out_t, b_out))     # resident weights
           + 2 * _nbytes((B_t, L_pad), jnp.float32)                    # output block
           + _nbytes((T_c, B_t, HP4), cd)                              # xg scratch
           + 2 * _nbytes((B_t, GS), jnp.float32))                      # h/c scratch
    vmem_limit = int(min(64 << 20, max(16 << 20, est + (4 << 20))))

    out = pl.pallas_call(
        kernel,
        out_shape=jax.ShapeDtypeStruct((B_pad, L_pad), jnp.float32),
        grid_spec=pltpu.PrefetchScalarGridSpec(
            num_scalar_prefetch=0,
            grid=(n_b, n_t),
            in_specs=[
                pl.BlockSpec((T_c, B_t, E_pad), lambda bi, ti: (ti, bi, 0)),
                pl.BlockSpec(w_ih_t.shape, lambda bi, ti: (0, 0)),
                pl.BlockSpec(w_hh_t.shape, lambda bi, ti: (0, 0)),
                pl.BlockSpec(b.shape, lambda bi, ti: (0, 0)),
                pl.BlockSpec(w_out_t.shape, lambda bi, ti: (0, 0)),
                pl.BlockSpec(b_out.shape, lambda bi, ti: (0, 0)),
            ],
            out_specs=pl.BlockSpec((B_t, L_pad), lambda bi, ti: (bi, 0)),
            scratch_shapes=[
                pltpu.VMEM((B_t, GS), jnp.float32),    # h carry across time chunks
                pltpu.VMEM((B_t, GS), jnp.float32),    # c carry across time chunks
                pltpu.VMEM((T_c, B_t, HP4), cd),       # hoisted input projection (bf16)
            ]),
        compiler_params=pltpu.CompilerParams(
            dimension_semantics=("parallel", "arbitrary"),
            vmem_limit_bytes=vmem_limit),
    )(x, w_ih_t, w_hh_t, b, w_out_t, b_out)

    return out[:B, :L]


def init_params(key, vocab_size, embedding_dim, hidden_dim, label_size,
                compute_dtype=jnp.bfloat16):
    """PyTorch-style LSTMClassifier init, packed into a padded, lane-aligned kernel layout.

    bf16 compute dtype is the default (halves weight/x/xg bytes, 2x MXU throughput on all
    generations); gates, h/c state, biases and log_softmax stay f32 inside the kernel.
    """
    E, H, L = embedding_dim, hidden_dim, label_size
    E_pad = _round_up(E, 128)
    L_pad = _round_up(L, 128)
    if H < 128:
        GS = H                              # compact: all 4 gates share lane blocks
        HP4 = _round_up(4 * H, 128)         # e.g. H=32 -> 4 gates in a single 128-lane block
    else:
        GS = _round_up(H, 128)              # each gate on its own 128-lane aligned range
        HP4 = 4 * GS

    k = jax.random.split(key, 7)
    s = 1.0 / math.sqrt(hidden_dim)

    embedding = jax.random.normal(k[0], (vocab_size, E), jnp.float32)
    w_ih = jax.random.uniform(k[1], (4 * H, E), jnp.float32, -s, s)   # gate order i,f,g,o
    w_hh = jax.random.uniform(k[2], (4 * H, H), jnp.float32, -s, s)
    b_ih = jax.random.uniform(k[3], (4 * H,), jnp.float32, -s, s)
    b_hh = jax.random.uniform(k[4], (4 * H,), jnp.float32, -s, s)
    w_out = jax.random.uniform(k[5], (L, H), jnp.float32, -s, s)
    b_out = jax.random.uniform(k[6], (L,), jnp.float32, -s, s)

    # Embedding: pad feature dim to a full 128-lane register (zero cols contribute nothing).
    emb_pad = jnp.zeros((vocab_size, E_pad), jnp.float32).at[:, :E].set(embedding)

    # Gate g occupies lanes [g*GS, g*GS + H); zero padding rows/cols keep padded hidden
    # units exactly 0 so they never contaminate real outputs.
    def pack_gate_weight(w, in_dim, in_rows):          # (4H, in_dim) -> (in_rows, HP4)
        out = jnp.zeros((in_rows, HP4), jnp.float32)
        for g in range(4):
            out = out.at[:in_dim, g * GS:g * GS + H].set(w[g * H:(g + 1) * H, :].T)
        return out

    w_ih_t = pack_gate_weight(w_ih, E, E_pad)
    w_hh_t = pack_gate_weight(w_hh, H, GS)

    b_sum = b_ih + b_hh
    b_packed = jnp.zeros((1, HP4), jnp.float32)
    for g in range(4):
        b_packed = b_packed.at[0, g * GS:g * GS + H].set(b_sum[g * H:(g + 1) * H])

    w_out_t = jnp.zeros((GS, L_pad), jnp.float32).at[:H, :L].set(w_out.T)
    # Padded label logits get a huge negative *float32* bias so log_softmax ignores them.
    # (Must stay f32: casting to bf16 would overflow to -inf and NaN the softmax.)
    b_out_p = jnp.full((1, L_pad), -1e30, jnp.float32).at[0, :L].set(b_out)

    cd = compute_dtype
    return {
        "embedding": emb_pad.astype(cd),
        "w_ih_t": w_ih_t.astype(cd),
        "w_hh_t": w_hh_t.astype(cd),
        "b": b_packed,                    # f32: added after f32 accumulation
        "w_out_t": w_out_t.astype(cd),
        "b_out": b_out_p,                 # f32: see note above
        "gate_stride": GS,
        "hidden_dim": hidden_dim,
        "label_size": label_size,
    }


def lstm_classifier_reference(sentence, params):
    """Pure-JAX reference on the same packed layout (mirrors the kernel's quantization)."""
    emb = params["embedding"]
    w_ih_t, w_hh_t = params["w_ih_t"], params["w_hh_t"]
    b, w_out_t, b_out = params["b"], params["w_out_t"], params["b_out"]
    GS, L = params["gate_stride"], params["label_size"]
    cd = w_ih_t.dtype
    T, B = sentence.shape
    hi = lax.Precision.HIGHEST

    x = jnp.take(emb, sentence, axis=0).astype(jnp.float32)          # (T, B, E_pad)
    w_ih_f = w_ih_t.astype(jnp.float32)
    w_hh_f = w_hh_t.astype(jnp.float32)
    w_out_f = w_out_t.astype(jnp.float32)

    # Mirror the kernel: input projection stored in compute dtype; bias added later in f32.
    xg = jnp.einsum("tbe,eh->tbh", x, w_ih_f, precision=hi)
    xg = xg.astype(cd).astype(jnp.float32)

    def step(carry, xg_t):
        h, c = carry
        gates = xg_t + jnp.dot(h.astype(cd).astype(jnp.float32), w_hh_f, precision=hi) + b
        i = jax.nn.sigmoid(gates[:, 0 * GS:1 * GS])
        f = jax.nn.sigmoid(gates[:, 1 * GS:2 * GS])
        g = jnp.tanh(gates[:, 2 * GS:3 * GS])
        o = jax.nn.sigmoid(gates[:, 3 * GS:4 * GS])
        c = f * c + i * g
        h = o * jnp.tanh(c)
        return (h, c), None

    h0 = jnp.zeros((B, GS), jnp.float32)
    (h, _), _ = lax.scan(step, (h0, h0), xg)
    y = jnp.dot(h.astype(cd).astype(jnp.float32), w_out_f, precision=hi) + b_out
    return jax.nn.log_softmax(y[:, :L], axis=-1)


if __name__ == "__main__":
    # Small shapes consistent with the module.
    vocab_size = 50
    embedding_dim = 16
    hidden_dim = 32
    label_size = 3
    batch_size = 2
    seq_len = 8

    key = jax.random.PRNGKey(0)
    pkey, skey = jax.random.split(key)
    params = init_params(pkey, vocab_size, embedding_dim, hidden_dim, label_size)

    # sentence: (seq_len, batch) int token ids (seq-first, as nn.LSTM default).
    sentence = jax.random.randint(skey, (seq_len, batch_size), 0, vocab_size,
                                  dtype=jnp.int32)

    log_probs = lstm_classifier_forward(sentence, params)
    jax.block_until_ready(log_probs)

    assert log_probs.shape == (batch_size, label_size)
    assert bool(jnp.all(jnp.isfinite(log_probs)))
    # Rows are valid log-probabilities.
    assert bool(jnp.allclose(jnp.sum(jnp.exp(log_probs), axis=-1), 1.0, atol=1e-3))
    # Match the pure-JAX reference (tolerance covers MXU accumulation order + bf16 scratch).
    ref = lstm_classifier_reference(sentence, params)
    assert bool(jnp.allclose(log_probs, ref, atol=3e-2, rtol=3e-2))

    print("KERNEL_OK")
</pallas_src>

<mosaic_0001>
module attributes {stable_mosaic.version = 11 : i64} {
  func.func @kernel(%arg0: i32, %arg1: i32, %arg2: memref<8x8x128xbf16, #tpu.memory_space<vmem>>, %arg3: memref<128x128xbf16, #tpu.memory_space<vmem>>, %arg4: memref<32x128xbf16, #tpu.memory_space<vmem>>, %arg5: memref<1x128xf32, #tpu.memory_space<vmem>>, %arg6: memref<32x128xbf16, #tpu.memory_space<vmem>>, %arg7: memref<1x128xf32, #tpu.memory_space<vmem>>, %arg8: memref<8x128xf32, #tpu.memory_space<vmem>>, %arg9: memref<8x32xf32, #tpu.memory_space<vmem>>, %arg10: memref<8x32xf32, #tpu.memory_space<vmem>>, %arg11: memref<8x8x128xbf16, #tpu.memory_space<vmem>>) attributes {dimension_semantics = [#tpu.dimension_semantics<parallel>, #tpu.dimension_semantics<arbitrary>], iteration_bounds = array<i64: 1, 1>, scalar_prefetch = 0 : i64, scratch_operands = 3 : i64, tpu.core_type = #tpu.core_type<tc>, window_params = [{transform_indices = @transform_0, window_bounds = array<i64: 8, 8, 128>}, {pipeline_mode = #tpu.pipeline_mode<synchronous>, transform_indices = @transform_1, window_bounds = array<i64: 128, 128>}, {pipeline_mode = #tpu.pipeline_mode<synchronous>, transform_indices = @transform_2, window_bounds = array<i64: 32, 128>}, {pipeline_mode = #tpu.pipeline_mode<synchronous>, transform_indices = @transform_3, window_bounds = array<i64: 1, 128>}, {pipeline_mode = #tpu.pipeline_mode<synchronous>, transform_indices = @transform_4, window_bounds = array<i64: 32, 128>}, {pipeline_mode = #tpu.pipeline_mode<synchronous>, transform_indices = @transform_5, window_bounds = array<i64: 1, 128>}, {transform_indices = @transform_6, window_bounds = array<i64: 8, 128>}]} {
    %c0_i32 = arith.constant 0 : i32
    %0 = arith.cmpi eq, %arg1, %c0_i32 : i32
    %1 = arith.extui %0 : i1 to i32
    %c0_i32_0 = arith.constant 0 : i32
    %2 = arith.cmpi ne, %1, %c0_i32_0 : i32
    scf.if %2 {
      %cst_69 = arith.constant 0.000000e+00 : f32
      %232 = vector.broadcast %cst_69 : f32 to vector<8x32xf32>
      %c0_70 = arith.constant 0 : index
      %c0_71 = arith.constant 0 : index
      %233 = vector.load %arg9[%c0_70, %c0_71] : memref<8x32xf32, #tpu.memory_space<vmem>>, vector<8x32xf32>
      tpu.vector_store %arg9[%c0_70, %c0_71], %232 {strides = array<i32>} : memref<8x32xf32, #tpu.memory_space<vmem>>, vector<8x32xf32>,
      %cst_72 = arith.constant 0.000000e+00 : f32
      %234 = vector.broadcast %cst_72 : f32 to vector<8x32xf32>
      %c0_73 = arith.constant 0 : index
      %c0_74 = arith.constant 0 : index
      %235 = vector.load %arg10[%c0_73, %c0_74] : memref<8x32xf32, #tpu.memory_space<vmem>>, vector<8x32xf32>
      tpu.vector_store %arg10[%c0_73, %c0_74], %234 {strides = array<i32>} : memref<8x32xf32, #tpu.memory_space<vmem>>, vector<8x32xf32>,
    } else {
    }
    %c0 = arith.constant 0 : index
    %c0_1 = arith.constant 0 : index
    %c0_2 = arith.constant 0 : index
    %3 = vector.load %arg2[%c0, %c0_1, %c0_2] : memref<8x8x128xbf16, #tpu.memory_space<vmem>>, vector<8x8x128xbf16>
    %4 = vector.shape_cast %3 : vector<8x8x128xbf16> to vector<64x128xbf16>
    %c0_3 = arith.constant 0 : index
    %c0_4 = arith.constant 0 : index
    %5 = vector.load %arg3[%c0_3, %c0_4] : memref<128x128xbf16, #tpu.memory_space<vmem>>, vector<128x128xbf16>
    %cst = arith.constant dense<0.000000e+00> : vector<64x128xf32>
    %6 = tpu.matmul %4, %5, %cst {dimension_numbers = #tpu.dot_dimension_numbers<[1], [0], [0], [1], [0, 0, 1, 1], [], []>} : vector<64x128xbf16>, vector<128x128xbf16>, vector<64x128xf32> -> vector<64x128xf32>
    %7 = vector.shape_cast %6 : vector<64x128xf32> to vector<8x8x128xf32>
    %8 = arith.truncf %7 : vector<8x8x128xf32> to vector<8x8x128xbf16>
    %c0_5 = arith.constant 0 : index
    %c0_6 = arith.constant 0 : index
    %c0_7 = arith.constant 0 : index
    %9 = vector.load %arg11[%c0_5, %c0_6, %c0_7] : memref<8x8x128xbf16, #tpu.memory_space<vmem>>, vector<8x8x128xbf16>
    tpu.vector_store %arg11[%c0_5, %c0_6, %c0_7], %8 {strides = array<i32>} : memref<8x8x128xbf16, #tpu.memory_space<vmem>>, vector<8x8x128xbf16>,
    %c0_8 = arith.constant 0 : index
    %c0_9 = arith.constant 0 : index
    %10 = vector.load %arg5[%c0_8, %c0_9] : memref<1x128xf32, #tpu.memory_space<vmem>>, vector<1x128xf32>
    %11 = tpu.iota {dimensions = array<i32: 1>} : vector<8x128xi32>
    %c64_i32 = arith.constant 64 : i32
    %12 = vector.broadcast %c64_i32 : i32 to vector<8x128xi32>
    %13 = arith.cmpi sge, %11, %12 : vector<8x128xi32>
    %c96_i32 = arith.constant 96 : i32
    %14 = vector.broadcast %c96_i32 : i32 to vector<8x128xi32>
    %15 = arith.cmpi slt, %11, %14 : vector<8x128xi32>
    %16 = arith.andi %13, %15 : vector<8x128xi1>
    %c0_10 = arith.constant 0 : index
    %c0_11 = arith.constant 0 : index
    %17 = vector.load %arg9[%c0_10, %c0_11] : memref<8x32xf32, #tpu.memory_space<vmem>>, vector<8x32xf32>
    %c0_12 = arith.constant 0 : index
    %c0_13 = arith.constant 0 : index
    %18 = vector.load %arg10[%c0_12, %c0_13] : memref<8x32xf32, #tpu.memory_space<vmem>>, vector<8x32xf32>
    %c0_i32_14 = arith.constant 0 : i32
    %19 = arith.index_cast %c0_i32_14 : i32 to index
    %c0_15 = arith.constant 0 : index
    %c0_16 = arith.constant 0 : index
    %20 = vector.load %arg11[%19, %c0_15, %c0_16] : memref<8x8x128xbf16, #tpu.memory_space<vmem>>, vector<1x8x128xbf16>
    %21 = vector.shape_cast %20 : vector<1x8x128xbf16> to vector<8x128xbf16>
    %22 = arith.extf %21 : vector<8x128xbf16> to vector<8x128xf32>
    %23 = arith.truncf %17 : vector<8x32xf32> to vector<8x32xbf16>
    %c0_17 = arith.constant 0 : index
    %c0_18 = arith.constant 0 : index
    %24 = vector.load %arg4[%c0_17, %c0_18] : memref<32x128xbf16, #tpu.memory_space<vmem>>, vector<32x128xbf16>
    %cst_19 = arith.constant dense<0.000000e+00> : vector<8x128xf32>
    %25 = tpu.matmul %23, %24, %cst_19 {dimension_numbers = #tpu.dot_dimension_numbers<[1], [0], [0], [1], [0, 0, 1, 1], [], []>} : vector<8x32xbf16>, vector<32x128xbf16>, vector<8x128xf32> -> vector<8x128xf32>
    %26 = arith.addf %22, %25 : vector<8x128xf32>
    %27 = vector.broadcast %10 : vector<1x128xf32> to vector<8x128xf32>
    %28 = arith.addf %26, %27 : vector<8x128xf32>
    %29 = arith.negf %28 : vector<8x128xf32>
    %30 = math.exp %29 : vector<8x128xf32>
    %cst_20 = arith.constant 1.000000e+00 : f32
    %31 = vector.broadcast %cst_20 : f32 to vector<8x128xf32>
    %32 = arith.addf %31, %30 : vector<8x128xf32>
    %33 = arith.divf %31, %32 : vector<8x128xf32>
    %34 = math.tanh %28 : vector<8x128xf32>
    %35 = arith.select %16, %34, %33 : vector<8x128xi1>, vector<8x128xf32>
    %36 = vector.extract_strided_slice %35 {offsets = [0, 0], sizes = [8, 32], strides = [1, 1]} : vector<8x128xf32> to vector<8x32xf32>
    %37 = vector.extract_strided_slice %35 {offsets = [0, 32], sizes = [8, 32], strides = [1, 1]} : vector<8x128xf32> to vector<8x32xf32>
    %38 = vector.extract_strided_slice %35 {offsets = [0, 64], sizes = [8, 32], strides = [1, 1]} : vector<8x128xf32> to vector<8x32xf32>
    %39 = vector.extract_strided_slice %35 {offsets = [0, 96], sizes = [8, 32], strides = [1, 1]} : vector<8x128xf32> to vector<8x32xf32>
    %40 = arith.mulf %37, %18 : vector<8x32xf32>
    %41 = arith.mulf %36, %38 : vector<8x32xf32>
    %42 = arith.addf %40, %41 : vector<8x32xf32>
    %43 = math.tanh %42 : vector<8x32xf32>
    %44 = arith.mulf %39, %43 : vector<8x32xf32>
    %c1_i32 = arith.constant 1 : i32
    %45 = arith.index_cast %c1_i32 : i32 to index
    %c0_21 = arith.constant 0 : index
    %c0_22 = arith.constant 0 : index
    %46 = vector.load %arg11[%45, %c0_21, %c0_22] : memref<8x8x128xbf16, #tpu.memory_space<vmem>>, vector<1x8x128xbf16>
    %47 = vector.shape_cast %46 : vector<1x8x128xbf16> to vector<8x128xbf16>
    %48 = arith.extf %47 : vector<8x128xbf16> to vector<8x128xf32>
    %49 = arith.truncf %44 : vector<8x32xf32> to vector<8x32xbf16>
    %c0_23 = arith.constant 0 : index
    %c0_24 = arith.constant 0 : index
    %50 = vector.load %arg4[%c0_23, %c0_24] : memref<32x128xbf16, #tpu.memory_space<vmem>>, vector<32x128xbf16>
    %cst_25 = arith.constant dense<0.000000e+00> : vector<8x128xf32>
    %51 = tpu.matmul %49, %50, %cst_25 {dimension_numbers = #tpu.dot_dimension_numbers<[1], [0], [0], [1], [0, 0, 1, 1], [], []>} : vector<8x32xbf16>, vector<32x128xbf16>, vector<8x128xf32> -> vector<8x128xf32>
    %52 = arith.addf %48, %51 : vector<8x128xf32>
    %53 = vector.broadcast %10 : vector<1x128xf32> to vector<8x128xf32>
    %54 = arith.addf %52, %53 : vector<8x128xf32>
    %55 = arith.negf %54 : vector<8x128xf32>
    %56 = math.exp %55 : vector<8x128xf32>
    %cst_26 = arith.constant 1.000000e+00 : f32
    %57 = vector.broadcast %cst_26 : f32 to vector<8x128xf32>
    %58 = arith.addf %57, %56 : vector<8x128xf32>
    %59 = arith.divf %57, %58 : vector<8x128xf32>
    %60 = math.tanh %54 : vector<8x128xf32>
    %61 = arith.select %16, %60, %59 : vector<8x128xi1>, vector<8x128xf32>
    %62 = vector.extract_strided_slice %61 {offsets = [0, 0], sizes = [8, 32], strides = [1, 1]} : vector<8x128xf32> to vector<8x32xf32>
    %63 = vector.extract_strided_slice %61 {offsets = [0, 32], sizes = [8, 32], strides = [1, 1]} : vector<8x128xf32> to vector<8x32xf32>
    %64 = vector.extract_strided_slice %61 {offsets = [0, 64], sizes = [8, 32], strides = [1, 1]} : vector<8x128xf32> to vector<8x32xf32>
    %65 = vector.extract_strided_slice %61 {offsets = [0, 96], sizes = [8, 32], strides = [1, 1]} : vector<8x128xf32> to vector<8x32xf32>
    %66 = arith.mulf %63, %42 : vector<8x32xf32>
    %67 = arith.mulf %62, %64 : vector<8x32xf32>
    %68 = arith.addf %66, %67 : vector<8x32xf32>
    %69 = math.tanh %68 : vector<8x32xf32>
    %70 = arith.mulf %65, %69 : vector<8x32xf32>
    %c2_i32 = arith.constant 2 : i32
    %71 = arith.index_cast %c2_i32 : i32 to index
    %c0_27 = arith.constant 0 : index
    %c0_28 = arith.constant 0 : index
    %72 = vector.load %arg11[%71, %c0_27, %c0_28] : memref<8x8x128xbf16, #tpu.memory_space<vmem>>, vector<1x8x128xbf16>
    %73 = vector.shape_cast %72 : vector<1x8x128xbf16> to vector<8x128xbf16>
    %74 = arith.extf %73 : vector<8x128xbf16> to vector<8x128xf32>
    %75 = arith.truncf %70 : vector<8x32xf32> to vector<8x32xbf16>
    %c0_29 = arith.constant 0 : index
    %c0_30 = arith.constant 0 : index
    %76 = vector.load %arg4[%c0_29, %c0_30] : memref<32x128xbf16, #tpu.memory_space<vmem>>, vector<32x128xbf16>
    %cst_31 = arith.constant dense<0.000000e+00> : vector<8x128xf32>
    %77 = tpu.matmul %75, %76, %cst_31 {dimension_numbers = #tpu.dot_dimension_numbers<[1], [0], [0], [1], [0, 0, 1, 1], [], []>} : vector<8x32xbf16>, vector<32x128xbf16>, vector<8x128xf32> -> vector<8x128xf32>
    %78 = arith.addf %74, %77 : vector<8x128xf32>
    %79 = vector.broadcast %10 : vector<1x128xf32> to vector<8x128xf32>
    %80 = arith.addf %78, %79 : vector<8x128xf32>
    %81 = arith.negf %80 : vector<8x128xf32>
    %82 = math.exp %81 : vector<8x128xf32>
    %cst_32 = arith.constant 1.000000e+00 : f32
    %83 = vector.broadcast %cst_32 : f32 to vector<8x128xf32>
    %84 = arith.addf %83, %82 : vector<8x128xf32>
    %85 = arith.divf %83, %84 : vector<8x128xf32>
    %86 = math.tanh %80 : vector<8x128xf32>
    %87 = arith.select %16, %86, %85 : vector<8x128xi1>, vector<8x128xf32>
    %88 = vector.extract_strided_slice %87 {offsets = [0, 0], sizes = [8, 32], strides = [1, 1]} : vector<8x128xf32> to vector<8x32xf32>
    %89 = vector.extract_strided_slice %87 {offsets = [0, 32], sizes = [8, 32], strides = [1, 1]} : vector<8x128xf32> to vector<8x32xf32>
    %90 = vector.extract_strided_slice %87 {offsets = [0, 64], sizes = [8, 32], strides = [1, 1]} : vector<8x128xf32> to vector<8x32xf32>
    %91 = vector.extract_strided_slice %87 {offsets = [0, 96], sizes = [8, 32], strides = [1, 1]} : vector<8x128xf32> to vector<8x32xf32>
    %92 = arith.mulf %89, %68 : vector<8x32xf32>
    %93 = arith.mulf %88, %90 : vector<8x32xf32>
    %94 = arith.addf %92, %93 : vector<8x32xf32>
    %95 = math.tanh %94 : vector<8x32xf32>
    %96 = arith.mulf %91, %95 : vector<8x32xf32>
    %c3_i32 = arith.constant 3 : i32
    %97 = arith.index_cast %c3_i32 : i32 to index
    %c0_33 = arith.constant 0 : index
    %c0_34 = arith.constant 0 : index
    %98 = vector.load %arg11[%97, %c0_33, %c0_34] : memref<8x8x128xbf16, #tpu.memory_space<vmem>>, vector<1x8x128xbf16>
    %99 = vector.shape_cast %98 : vector<1x8x128xbf16> to vector<8x128xbf16>
    %100 = arith.extf %99 : vector<8x128xbf16> to vector<8x128xf32>
    %101 = arith.truncf %96 : vector<8x32xf32> to vector<8x32xbf16>
    %c0_35 = arith.constant 0 : index
    %c0_36 = arith.constant 0 : index
    %102 = vector.load %arg4[%c0_35, %c0_36] : memref<32x128xbf16, #tpu.memory_space<vmem>>, vector<32x128xbf16>
    %cst_37 = arith.constant dense<0.000000e+00> : vector<8x128xf32>
    %103 = tpu.matmul %101, %102, %cst_37 {dimension_numbers = #tpu.dot_dimension_numbers<[1], [0], [0], [1], [0, 0, 1, 1], [], []>} : vector<8x32xbf16>, vector<32x128xbf16>, vector<8x128xf32> -> vector<8x128xf32>
    %104 = arith.addf %100, %103 : vector<8x128xf32>
    %105 = vector.broadcast %10 : vector<1x128xf32> to vector<8x128xf32>
    %106 = arith.addf %104, %105 : vector<8x128xf32>
    %107 = arith.negf %106 : vector<8x128xf32>
    %108 = math.exp %107 : vector<8x128xf32>
    %cst_38 = arith.constant 1.000000e+00 : f32
    %109 = vector.broadcast %cst_38 : f32 to vector<8x128xf32>
    %110 = arith.addf %109, %108 : vector<8x128xf32>
    %111 = arith.divf %109, %110 : vector<8x128xf32>
    %112 = math.tanh %106 : vector<8x128xf32>
    %113 = arith.select %16, %112, %111 : vector<8x128xi1>, vector<8x128xf32>
    %114 = vector.extract_strided_slice %113 {offsets = [0, 0], sizes = [8, 32], strides = [1, 1]} : vector<8x128xf32> to vector<8x32xf32>
    %115 = vector.extract_strided_slice %113 {offsets = [0, 32], sizes = [8, 32], strides = [1, 1]} : vector<8x128xf32> to vector<8x32xf32>
    %116 = vector.extract_strided_slice %113 {offsets = [0, 64], sizes = [8, 32], strides = [1, 1]} : vector<8x128xf32> to vector<8x32xf32>
    %117 = vector.extract_strided_slice %113 {offsets = [0, 96], sizes = [8, 32], strides = [1, 1]} : vector<8x128xf32> to vector<8x32xf32>
    %118 = arith.mulf %115, %94 : vector<8x32xf32>
    %119 = arith.mulf %114, %116 : vector<8x32xf32>
    %120 = arith.addf %118, %119 : vector<8x32xf32>
    %121 = math.tanh %120 : vector<8x32xf32>
    %122 = arith.mulf %117, %121 : vector<8x32xf32>
    %c4_i32 = arith.constant 4 : i32
    %123 = arith.index_cast %c4_i32 : i32 to index
    %c0_39 = arith.constant 0 : index
    %c0_40 = arith.constant 0 : index
    %124 = vector.load %arg11[%123, %c0_39, %c0_40] : memref<8x8x128xbf16, #tpu.memory_space<vmem>>, vector<1x8x128xbf16>
    %125 = vector.shape_cast %124 : vector<1x8x128xbf16> to vector<8x128xbf16>
    %126 = arith.extf %125 : vector<8x128xbf16> to vector<8x128xf32>
    %127 = arith.truncf %122 : vector<8x32xf32> to vector<8x32xbf16>
    %c0_41 = arith.constant 0 : index
    %c0_42 = arith.constant 0 : index
    %128 = vector.load %arg4[%c0_41, %c0_42] : memref<32x128xbf16, #tpu.memory_space<vmem>>, vector<32x128xbf16>
    %cst_43 = arith.constant dense<0.000000e+00> : vector<8x128xf32>
    %129 = tpu.matmul %127, %128, %cst_43 {dimension_numbers = #tpu.dot_dimension_numbers<[1], [0], [0], [1], [0, 0, 1, 1], [], []>} : vector<8x32xbf16>, vector<32x128xbf16>, vector<8x128xf32> -> vector<8x128xf32>
    %130 = arith.addf %126, %129 : vector<8x128xf32>
    %131 = vector.broadcast %10 : vector<1x128xf32> to vector<8x128xf32>
    %132 = arith.addf %130, %131 : vector<8x128xf32>
    %133 = arith.negf %132 : vector<8x128xf32>
    %134 = math.exp %133 : vector<8x128xf32>
    %cst_44 = arith.constant 1.000000e+00 : f32
    %135 = vector.broadcast %cst_44 : f32 to vector<8x128xf32>
    %136 = arith.addf %135, %134 : vector<8x128xf32>
    %137 = arith.divf %135, %136 : vector<8x128xf32>
    %138 = math.tanh %132 : vector<8x128xf32>
    %139 = arith.select %16, %138, %137 : vector<8x128xi1>, vector<8x128xf32>
    %140 = vector.extract_strided_slice %139 {offsets = [0, 0], sizes = [8, 32], strides = [1, 1]} : vector<8x128xf32> to vector<8x32xf32>
    %141 = vector.extract_strided_slice %139 {offsets = [0, 32], sizes = [8, 32], strides = [1, 1]} : vector<8x128xf32> to vector<8x32xf32>
    %142 = vector.extract_strided_slice %139 {offsets = [0, 64], sizes = [8, 32], strides = [1, 1]} : vector<8x128xf32> to vector<8x32xf32>
    %143 = vector.extract_strided_slice %139 {offsets = [0, 96], sizes = [8, 32], strides = [1, 1]} : vector<8x128xf32> to vector<8x32xf32>
    %144 = arith.mulf %141, %120 : vector<8x32xf32>
    %145 = arith.mulf %140, %142 : vector<8x32xf32>
    %146 = arith.addf %144, %145 : vector<8x32xf32>
    %147 = math.tanh %146 : vector<8x32xf32>
    %148 = arith.mulf %143, %147 : vector<8x32xf32>
    %c5_i32 = arith.constant 5 : i32
    %149 = arith.index_cast %c5_i32 : i32 to index
    %c0_45 = arith.constant 0 : index
    %c0_46 = arith.constant 0 : index
    %150 = vector.load %arg11[%149, %c0_45, %c0_46] : memref<8x8x128xbf16, #tpu.memory_space<vmem>>, vector<1x8x128xbf16>
    %151 = vector.shape_cast %150 : vector<1x8x128xbf16> to vector<8x128xbf16>
    %152 = arith.extf %151 : vector<8x128xbf16> to vector<8x128xf32>
    %153 = arith.truncf %148 : vector<8x32xf32> to vector<8x32xbf16>
    %c0_47 = arith.constant 0 : index
    %c0_48 = arith.constant 0 : index
    %154 = vector.load %arg4[%c0_47, %c0_48] : memref<32x128xbf16, #tpu.memory_space<vmem>>, vector<32x128xbf16>
    %cst_49 = arith.constant dense<0.000000e+00> : vector<8x128xf32>
    %155 = tpu.matmul %153, %154, %cst_49 {dimension_numbers = #tpu.dot_dimension_numbers<[1], [0], [0], [1], [0, 0, 1, 1], [], []>} : vector<8x32xbf16>, vector<32x128xbf16>, vector<8x128xf32> -> vector<8x128xf32>
    %156 = arith.addf %152, %155 : vector<8x128xf32>
    %157 = vector.broadcast %10 : vector<1x128xf32> to vector<8x128xf32>
    %158 = arith.addf %156, %157 : vector<8x128xf32>
    %159 = arith.negf %158 : vector<8x128xf32>
    %160 = math.exp %159 : vector<8x128xf32>
    %cst_50 = arith.constant 1.000000e+00 : f32
    %161 = vector.broadcast %cst_50 : f32 to vector<8x128xf32>
    %162 = arith.addf %161, %160 : vector<8x128xf32>
    %163 = arith.divf %161, %162 : vector<8x128xf32>
    %164 = math.tanh %158 : vector<8x128xf32>
    %165 = arith.select %16, %164, %163 : vector<8x128xi1>, vector<8x128xf32>
    %166 = vector.extract_strided_slice %165 {offsets = [0, 0], sizes = [8, 32], strides = [1, 1]} : vector<8x128xf32> to vector<8x32xf32>
    %167 = vector.extract_strided_slice %165 {offsets = [0, 32], sizes = [8, 32], strides = [1, 1]} : vector<8x128xf32> to vector<8x32xf32>
    %168 = vector.extract_strided_slice %165 {offsets = [0, 64], sizes = [8, 32], strides = [1, 1]} : vector<8x128xf32> to vector<8x32xf32>
    %169 = vector.extract_strided_slice %165 {offsets = [0, 96], sizes = [8, 32], strides = [1, 1]} : vector<8x128xf32> to vector<8x32xf32>
    %170 = arith.mulf %167, %146 : vector<8x32xf32>
    %171 = arith.mulf %166, %168 : vector<8x32xf32>
    %172 = arith.addf %170, %171 : vector<8x32xf32>
    %173 = math.tanh %172 : vector<8x32xf32>
    %174 = arith.mulf %169, %173 : vector<8x32xf32>
    %c6_i32 = arith.constant 6 : i32
    %175 = arith.index_cast %c6_i32 : i32 to index
    %c0_51 = arith.constant 0 : index
    %c0_52 = arith.constant 0 : index
    %176 = vector.load %arg11[%175, %c0_51, %c0_52] : memref<8x8x128xbf16, #tpu.memory_space<vmem>>, vector<1x8x128xbf16>
    %177 = vector.shape_cast %176 : vector<1x8x128xbf16> to vector<8x128xbf16>
    %178 = arith.extf %177 : vector<8x128xbf16> to vector<8x128xf32>
    %179 = arith.truncf %174 : vector<8x32xf32> to vector<8x32xbf16>
    %c0_53 = arith.constant 0 : index
    %c0_54 = arith.constant 0 : index
    %180 = vector.load %arg4[%c0_53, %c0_54] : memref<32x128xbf16, #tpu.memory_space<vmem>>, vector<32x128xbf16>
    %cst_55 = arith.constant dense<0.000000e+00> : vector<8x128xf32>
    %181 = tpu.matmul %179, %180, %cst_55 {dimension_numbers = #tpu.dot_dimension_numbers<[1], [0], [0], [1], [0, 0, 1, 1], [], []>} : vector<8x32xbf16>, vector<32x128xbf16>, vector<8x128xf32> -> vector<8x128xf32>
    %182 = arith.addf %178, %181 : vector<8x128xf32>
    %183 = vector.broadcast %10 : vector<1x128xf32> to vector<8x128xf32>
    %184 = arith.addf %182, %183 : vector<8x128xf32>
    %185 = arith.negf %184 : vector<8x128xf32>
    %186 = math.exp %185 : vector<8x128xf32>
    %cst_56 = arith.constant 1.000000e+00 : f32
    %187 = vector.broadcast %cst_56 : f32 to vector<8x128xf32>
    %188 = arith.addf %187, %186 : vector<8x128xf32>
    %189 = arith.divf %187, %188 : vector<8x128xf32>
    %190 = math.tanh %184 : vector<8x128xf32>
    %191 = arith.select %16, %190, %189 : vector<8x128xi1>, vector<8x128xf32>
    %192 = vector.extract_strided_slice %191 {offsets = [0, 0], sizes = [8, 32], strides = [1, 1]} : vector<8x128xf32> to vector<8x32xf32>
    %193 = vector.extract_strided_slice %191 {offsets = [0, 32], sizes = [8, 32], strides = [1, 1]} : vector<8x128xf32> to vector<8x32xf32>
    %194 = vector.extract_strided_slice %191 {offsets = [0, 64], sizes = [8, 32], strides = [1, 1]} : vector<8x128xf32> to vector<8x32xf32>
    %195 = vector.extract_strided_slice %191 {offsets = [0, 96], sizes = [8, 32], strides = [1, 1]} : vector<8x128xf32> to vector<8x32xf32>
    %196 = arith.mulf %193, %172 : vector<8x32xf32>
    %197 = arith.mulf %192, %194 : vector<8x32xf32>
    %198 = arith.addf %196, %197 : vector<8x32xf32>
    %199 = math.tanh %198 : vector<8x32xf32>
    %200 = arith.mulf %195, %199 : vector<8x32xf32>
    %c7_i32 = arith.constant 7 : i32
    %201 = arith.index_cast %c7_i32 : i32 to index
    %c0_57 = arith.constant 0 : index
    %c0_58 = arith.constant 0 : index
    %202 = vector.load %arg11[%201, %c0_57, %c0_58] : memref<8x8x128xbf16, #tpu.memory_space<vmem>>, vector<1x8x128xbf16>
    %203 = vector.shape_cast %202 : vector<1x8x128xbf16> to vector<8x128xbf16>
    %204 = arith.extf %203 : vector<8x128xbf16> to vector<8x128xf32>
    %205 = arith.truncf %200 : vector<8x32xf32> to vector<8x32xbf16>
    %c0_59 = arith.constant 0 : index
    %c0_60 = arith.constant 0 : index
    %206 = vector.load %arg4[%c0_59, %c0_60] : memref<32x128xbf16, #tpu.memory_space<vmem>>, vector<32x128xbf16>
    %cst_61 = arith.constant dense<0.000000e+00> : vector<8x128xf32>
    %207 = tpu.matmul %205, %206, %cst_61 {dimension_numbers = #tpu.dot_dimension_numbers<[1], [0], [0], [1], [0, 0, 1, 1], [], []>} : vector<8x32xbf16>, vector<32x128xbf16>, vector<8x128xf32> -> vector<8x128xf32>
    %208 = arith.addf %204, %207 : vector<8x128xf32>
    %209 = vector.broadcast %10 : vector<1x128xf32> to vector<8x128xf32>
    %210 = arith.addf %208, %209 : vector<8x128xf32>
    %211 = arith.negf %210 : vector<8x128xf32>
    %212 = math.exp %211 : vector<8x128xf32>
    %cst_62 = arith.constant 1.000000e+00 : f32
    %213 = vector.broadcast %cst_62 : f32 to vector<8x128xf32>
    %214 = arith.addf %213, %212 : vector<8x128xf32>
    %215 = arith.divf %213, %214 : vector<8x128xf32>
    %216 = math.tanh %210 : vector<8x128xf32>
    %217 = arith.select %16, %216, %215 : vector<8x128xi1>, vector<8x128xf32>
    %218 = vector.extract_strided_slice %217 {offsets = [0, 0], sizes = [8, 32], strides = [1, 1]} : vector<8x128xf32> to vector<8x32xf32>
    %219 = vector.extract_strided_slice %217 {offsets = [0, 32], sizes = [8, 32], strides = [1, 1]} : vector<8x128xf32> to vector<8x32xf32>
    %220 = vector.extract_strided_slice %217 {offsets = [0, 64], sizes = [8, 32], strides = [1, 1]} : vector<8x128xf32> to vector<8x32xf32>
    %221 = vector.extract_strided_slice %217 {offsets = [0, 96], sizes = [8, 32], strides = [1, 1]} : vector<8x128xf32> to vector<8x32xf32>
    %222 = arith.mulf %219, %198 : vector<8x32xf32>
    %223 = arith.mulf %218, %220 : vector<8x32xf32>
    %224 = arith.addf %222, %223 : vector<8x32xf32>
    %225 = math.tanh %224 : vector<8x32xf32>
    %226 = arith.mulf %221, %225 : vector<8x32xf32>
    %c8_i32 = arith.constant 8 : i32
    %c0_63 = arith.constant 0 : index
    %c0_64 = arith.constant 0 : index
    %227 = vector.load %arg9[%c0_63, %c0_64] : memref<8x32xf32, #tpu.memory_space<vmem>>, vector<8x32xf32>
    tpu.vector_store %arg9[%c0_63, %c0_64], %226 {strides = array<i32>} : memref<8x32xf32, #tpu.memory_space<vmem>>, vector<8x32xf32>,
    %c0_65 = arith.constant 0 : index
    %c0_66 = arith.constant 0 : index
    %228 = vector.load %arg10[%c0_65, %c0_66] : memref<8x32xf32, #tpu.memory_space<vmem>>, vector<8x32xf32>
    tpu.vector_store %arg10[%c0_65, %c0_66], %224 {strides = array<i32>} : memref<8x32xf32, #tpu.memory_space<vmem>>, vector<8x32xf32>,
    %c0_i32_67 = arith.constant 0 : i32
    %229 = arith.cmpi eq, %arg1, %c0_i32_67 : i32
    %230 = arith.extui %229 : i1 to i32
    %c0_i32_68 = arith.constant 0 : i32
    %231 = arith.cmpi ne, %230, %c0_i32_68 : i32
    scf.if %231 {
      %232 = arith.truncf %226 : vector<8x32xf32> to vector<8x32xbf16>
      %c0_69 = arith.constant 0 : index
      %c0_70 = arith.constant 0 : index
      %233 = vector.load %arg6[%c0_69, %c0_70] : memref<32x128xbf16, #tpu.memory_space<vmem>>, vector<32x128xbf16>
      %cst_71 = arith.constant dense<0.000000e+00> : vector<8x128xf32>
      %234 = tpu.matmul %232, %233, %cst_71 {dimension_numbers = #tpu.dot_dimension_numbers<[1], [0], [0], [1], [0, 0, 1, 1], [], []>} : vector<8x32xbf16>, vector<32x128xbf16>, vector<8x128xf32> -> vector<8x128xf32>
      %c0_72 = arith.constant 0 : index
      %c0_73 = arith.constant 0 : index
      %235 = vector.load %arg7[%c0_72, %c0_73] : memref<1x128xf32, #tpu.memory_space<vmem>>, vector<1x128xf32>
      %236 = vector.broadcast %235 : vector<1x128xf32> to vector<8x128xf32>
      %237 = arith.addf %234, %236 : vector<8x128xf32>
      %cst_74 = arith.constant dense<0xFF800000> : vector<8xf32>
      %238 = vector.multi_reduction <maximumf>, %237, %cst_74 [1] : vector<8x128xf32> to vector<8xf32>
      %239 = vector.shape_cast %238 : vector<8xf32> to vector<8x1xf32>
      %240 = vector.broadcast %239 : vector<8x1xf32> to vector<8x128xf32>
      %241 = arith.subf %237, %240 : vector<8x128xf32>
      %242 = math.exp %241 : vector<8x128xf32>
      %cst_75 = arith.constant dense<0.000000e+00> : vector<8xf32>
      %243 = vector.multi_reduction <add>, %242, %cst_75 [1] : vector<8x128xf32> to vector<8xf32>
      %244 = vector.shape_cast %243 : vector<8xf32> to vector<8x1xf32>
      %245 = math.log %244 : vector<8x1xf32>
      %246 = arith.addf %239, %245 : vector<8x1xf32>
      %247 = vector.broadcast %246 : vector<8x1xf32> to vector<8x128xf32>
      %248 = arith.subf %237, %247 : vector<8x128xf32>
      %c0_76 = arith.constant 0 : index
      %c0_77 = arith.constant 0 : index
      %249 = vector.load %arg8[%c0_76, %c0_77] : memref<8x128xf32, #tpu.memory_space<vmem>>, vector<8x128xf32>
      tpu.vector_store %arg8[%c0_76, %c0_77], %248 {strides = array<i32>} : memref<8x128xf32, #tpu.memory_space<vmem>>, vector<8x128xf32>,
    } else {
    }
    return
  }
  func.func @transform_0(%arg0: i32, %arg1: i32) -> (i32, i32, i32) {
    %c0_i32 = arith.constant 0 : i32
    %c0_i32_0 = arith.constant 0 : i32
    return %arg1, %arg0, %c0_i32 : i32, i32, i32
  }
  func.func @transform_1(%arg0: i32, %arg1: i32) -> (i32, i32) {
    %c0_i32 = arith.constant 0 : i32
    %c0_i32_0 = arith.constant 0 : i32
    %c0_i32_1 = arith.constant 0 : i32
    return %c0_i32, %c0_i32_0 : i32, i32
  }
  func.func @transform_2(%arg0: i32, %arg1: i32) -> (i32, i32) {
    %c0_i32 = arith.constant 0 : i32
    %c0_i32_0 = arith.constant 0 : i32
    %c0_i32_1 = arith.constant 0 : i32
    return %c0_i32, %c0_i32_0 : i32, i32
  }
  func.func @transform_3(%arg0: i32, %arg1: i32) -> (i32, i32) {
    %c0_i32 = arith.constant 0 : i32
    %c0_i32_0 = arith.constant 0 : i32
    %c0_i32_1 = arith.constant 0 : i32
    return %c0_i32, %c0_i32_0 : i32, i32
  }
  func.func @transform_4(%arg0: i32, %arg1: i32) -> (i32, i32) {
    %c0_i32 = arith.constant 0 : i32
    %c0_i32_0 = arith.constant 0 : i32
    %c0_i32_1 = arith.constant 0 : i32
    return %c0_i32, %c0_i32_0 : i32, i32
  }
  func.func @transform_5(%arg0: i32, %arg1: i32) -> (i32, i32) {
    %c0_i32 = arith.constant 0 : i32
    %c0_i32_0 = arith.constant 0 : i32
    %c0_i32_1 = arith.constant 0 : i32
    return %c0_i32, %c0_i32_0 : i32, i32
  }
  func.func @transform_6(%arg0: i32, %arg1: i32) -> (i32, i32) {
    %c0_i32 = arith.constant 0 : i32
    %c0_i32_0 = arith.constant 0 : i32
    return %arg0, %c0_i32 : i32, i32
  }
}

</mosaic_0001>

<llo_original>
// kernel: tpu_custom_call.1
$region0: #{tpu_custom_call.1}
  #allocation0 [shape = 'u32[]', space=smem, size = 0x4, offset = 0x4, fixed_abs, tag = 'smem constant byte address 0x4 - core index']
  #allocation1 [shape = 'u32[144,128]{1,0:T(1,128)}', space=vmem, size = 0x12000, scoped, tag = 'internal scratch']
  #allocation2 [shape = 'f32[8,32]{1,0:T(8,128)}', space=vmem, size = 0x1000, scoped, tag = 'scratch operand']
  #allocation3 [shape = 'f32[8,32]{1,0:T(8,128)}', space=vmem, size = 0x1000, scoped, tag = 'scratch operand']
  #allocation4 [shape = 'bf16[8,8,128]{2,1,0:T(8,128)(2,1)}', space=vmem, size = 0x4000, scoped, tag = 'scratch operand']
  %s0 = inlined_call_operand.hbm [shape: bf16[8,8,128], index: 0, kind: input, shape index: {}]
  %s1 = inlined_call_operand.hbm [shape: bf16[128,128], index: 1, kind: input, shape index: {}]
  %s2 = inlined_call_operand.hbm [shape: bf16[32,128], index: 2, kind: input, shape index: {}]
  %s3 = inlined_call_operand.vmem [shape: f32[1,128], index: 3, kind: input, shape index: {}]
  %s4 = inlined_call_operand.hbm [shape: bf16[32,128], index: 4, kind: input, shape index: {}]
  %s5 = inlined_call_operand.vmem [shape: f32[1,128], index: 5, kind: input, shape index: {}]
  %s6 = inlined_call_operand.hbm [shape: f32[8,128], index: 6, kind: output, shape index: {}]
  %s7 = sld [smem:[#allocation0]]
  $region58: #{tpu_custom_call.1} parent=0
    _
  %s9 = ssub.s32 1, %s7
  %s10 = scalar_select 0, %s9, %s7
  $region1: #{tpu_custom_call.1} parent=0
    #allocation5 [shape = 'u8[16384]{0}', space=vmem, size = 0x4000, scoped, tag = 'input window, operand 0, single buffered']
    #allocation6 [shape = 's32[1]{0}', space=sflag, size = 0x4, scoped, tag = 'scoped memory for tpu_custom_call.1']
    #allocation7 [shape = 's32[1]{0}', space=sflag, size = 0x4, scoped, tag = 'scoped memory for tpu_custom_call.1']
    #allocation8 [shape = 'u8[32768]{0}', space=vmem, size = 0x8000, scoped, tag = 'input window, operand 1, single buffered']
    #allocation9 [shape = 's32[1]{0}', space=sflag, size = 0x4, scoped, tag = 'scoped memory for tpu_custom_call.1']
    #allocation10 [shape = 'u8[8192]{0}', space=vmem, size = 0x2000, scoped, tag = 'input window, operand 2, single buffered']
    #allocation11 [shape = 'u8[8192]{0}', space=vmem, size = 0x2000, scoped, tag = 'input window, operand 4, single buffered']
    #allocation12 [shape = 's32[1]{0}', space=sflag, size = 0x4, scoped, tag = 'scoped memory for tpu_custom_call.1']
    #allocation13 [shape = 'u8[4096]{0}', space=vmem, size = 0x1000, scoped, tag = 'output window, operand 0, single buffered']
    %11 = vsyncpa [#allocation6], 0
    %12 = vsyncpa [#allocation9], 0
    %13 = vsyncpa [#allocation12], 0
    %14 = vsyncpa [#allocation7], 0
    // Predicated region
    $region2: #{tpu_custom_call.1} parent=1 // pred_check
      _
    $region3: #{tpu_custom_call.1} parent=1 // pred_check_branch
      %16 = sbr.rel (0) target = $region5
    $region4: #{tpu_custom_call.1} parent=1 // pred_region
      %s18 = ssub.s32 512, 512
      %19 = vsyncadd [#allocation6], %s18
      %s20 = sshll.u32 [#allocation5], 4
      %s21 = int_to_ptr.vmem [resolvable:$true] %s20
      %26 = dma.hbm_to_vmem [thread:$0]  %s0, 512, %s21, [#allocation6], 64, 64, 4
    $region5: #{tpu_custom_call.1} parent=1 // pred_fallthru
      _
    // Predicated region
    $region6: #{tpu_custom_call.1} parent=1 // pred_check
      _
    $region7: #{tpu_custom_call.1} parent=1 // pred_check_branch
      %28 = sbr.rel (0) target = $region9
    $region8: #{tpu_custom_call.1} parent=1 // pred_region
      %s30 = ssub.s32 1024, 1024
      %31 = vsyncadd [#allocation9], %s30
      %s32 = sshll.u32 [#allocation8], 4
      %s33 = int_to_ptr.vmem [resolvable:$true] %s32
      %38 = dma.hbm_to_vmem [thread:$0]  %s1, 1024, %s33, [#allocation9], 64, 64, 4
    $region9: #{tpu_custom_call.1} parent=1 // pred_fallthru
      _
    // Predicated region
    $region10: #{tpu_custom_call.1} parent=1 // pred_check
      _
    $region11: #{tpu_custom_call.1} parent=1 // pred_check_branch
      %40 = sbr.rel (0) target = $region13
    $region12: #{tpu_custom_call.1} parent=1 // pred_region
      %s42 = ssub.s32 256, 256
      %43 = vsyncadd [#allocation9], %s42
      %s44 = sshll.u32 [#allocation10], 4
      %s45 = int_to_ptr.vmem [resolvable:$true] %s44
      %50 = dma.hbm_to_vmem [thread:$0]  %s2, 256, %s45, [#allocation9], 64, 64, 4
    $region13: #{tpu_custom_call.1} parent=1 // pred_fallthru
      _
    // Predicated region
    $region14: #{tpu_custom_call.1} parent=1 // pred_check
      _
    $region15: #{tpu_custom_call.1} parent=1 // pred_check_branch
      %52 = sbr.rel (0) target = $region17
    $region16: #{tpu_custom_call.1} parent=1 // pred_region
      _
    $region17: #{tpu_custom_call.1} parent=1 // pred_fallthru
      _
    // Predicated region
    $region18: #{tpu_custom_call.1} parent=1 // pred_check
      _
    $region19: #{tpu_custom_call.1} parent=1 // pred_check_branch
      %54 = sbr.rel (0) target = $region21
    $region20: #{tpu_custom_call.1} parent=1 // pred_region
      %s56 = ssub.s32 256, 256
      %57 = vsyncadd [#allocation12], %s56
      %s58 = sshll.u32 [#allocation11], 4
      %s59 = int_to_ptr.vmem [resolvable:$true] %s58
      %64 = dma.hbm_to_vmem [thread:$0]  %s4, 256, %s59, [#allocation12], 64, 64, 4
    $region21: #{tpu_custom_call.1} parent=1 // pred_fallthru
      _
    // Predicated region
    $region22: #{tpu_custom_call.1} parent=1 // pred_check
      _
    $region23: #{tpu_custom_call.1} parent=1 // pred_check_branch
      %66 = sbr.rel (0) target = $region25
    $region24: #{tpu_custom_call.1} parent=1 // pred_region
      _
    $region25: #{tpu_custom_call.1} parent=1 // pred_fallthru
      _
    // Predicated region
    $region26: #{tpu_custom_call.1} parent=1 // pred_check
      _
    $region27: #{tpu_custom_call.1} parent=1 // pred_check_branch
      %68 = sbr.rel (0) target = $region29
    $region28: #{tpu_custom_call.1} parent=1 // pred_region
      %69 = dma.done [#allocation6], 512
    $region29: #{tpu_custom_call.1} parent=1 // pred_fallthru
      _
    // Predicated region
    $region30: #{tpu_custom_call.1} parent=1 // pred_check
      _
    $region31: #{tpu_custom_call.1} parent=1 // pred_check_branch
      %71 = sbr.rel (0) target = $region33
    $region32: #{tpu_custom_call.1} parent=1 // pred_region
      %72 = dma.done [#allocation9], 1024
    $region33: #{tpu_custom_call.1} parent=1 // pred_fallthru
      _
    // Predicated region
    $region34: #{tpu_custom_call.1} parent=1 // pred_check
      _
    $region35: #{tpu_custom_call.1} parent=1 // pred_check_branch
      %74 = sbr.rel (0) target = $region37
    $region36: #{tpu_custom_call.1} parent=1 // pred_region
      %75 = dma.done [#allocation9], 256
    $region37: #{tpu_custom_call.1} parent=1 // pred_fallthru
      _
    // Predicated region
    $region38: #{tpu_custom_call.1} parent=1 // pred_check
      _
    $region39: #{tpu_custom_call.1} parent=1 // pred_check_branch
      %77 = sbr.rel (0) target = $region41
    $region40: #{tpu_custom_call.1} parent=1 // pred_region
      %78 = dma.done [#allocation12], 256
    $region41: #{tpu_custom_call.1} parent=1 // pred_fallthru
      _
    %p80 = scmp.eq.s32.totalorder 0, 0
    // Predicated region
    $region42: #{tpu_custom_call.1} parent=1 // pred_check
      %p81 = pneg %p80
    $region43: #{tpu_custom_call.1} parent=1 // pred_check_branch
      %83 = sbr.rel (%p81) target = $region45
    $region44: #{tpu_custom_call.1} parent=1 // pred_region
      %vm84 = vcmask 261120
      %85 = vst.msk [vmem:[#allocation2] sm:$0xff] %vm84, 0.0
      %86 = vst.msk [vmem:[#allocation3] sm:$0xff] %vm84, 0.0
    $region45: #{tpu_custom_call.1} parent=1 // pred_fallthru
      _
    %v87 = vld [vmem:[#allocation5] sm:$0xf]
    %v88 = vld [vmem:[#allocation5 + $0x4] sm:$0xf]
    %v89 = vld [vmem:[#allocation5 + $0x8] sm:$0xf]
    %v90 = vld [vmem:[#allocation5 + $0xc] sm:$0xf]
    %v91 = vld [vmem:[#allocation5 + $0x10] sm:$0xf]
    %v92 = vld [vmem:[#allocation5 + $0x14] sm:$0xf]
    %v93 = vld [vmem:[#allocation5 + $0x18] sm:$0xf]
    %v94 = vld [vmem:[#allocation5 + $0x1c] sm:$0xf]
    %v95 = vld [vmem:[#allocation8] sm:$0xf]
    %v96 = vld [vmem:[#allocation8 + $0x4] sm:$0xf]
    %v97 = vld [vmem:[#allocation8 + $0x8] sm:$0xf]
    %v98 = vld [vmem:[#allocation8 + $0xc] sm:$0xf]
    %v99 = vld [vmem:[#allocation8 + $0x10] sm:$0xf]
    %v100 = vld [vmem:[#allocation8 + $0x14] sm:$0xf]
    %v101 = vld [vmem:[#allocation8 + $0x18] sm:$0xf]
    %v102 = vld [vmem:[#allocation8 + $0x1c] sm:$0xf]
    %v103 = vld [vmem:[#allocation8 + $0x20] sm:$0xf]
    %v104 = vld [vmem:[#allocation8 + $0x24] sm:$0xf]
    %v105 = vld [vmem:[#allocation8 + $0x28] sm:$0xf]
    %v106 = vld [vmem:[#allocation8 + $0x2c] sm:$0xf]
    %v107 = vld [vmem:[#allocation8 + $0x30] sm:$0xf]
    %v108 = vld [vmem:[#allocation8 + $0x34] sm:$0xf]
    %v109 = vld [vmem:[#allocation8 + $0x38] sm:$0xf]
    %v110 = vld [vmem:[#allocation8 + $0x3c] sm:$0xf]
    %v119 = vunpack.c.l.b16 %v87
    %v120 = vunpack.c.l.b16 %v88
    %v121 = vunpack.c.l.b16 %v89
    %v122 = vunpack.c.l.b16 %v90
    %v123 = vunpack.c.l.b16 %v91
    %v124 = vunpack.c.l.b16 %v92
    %v125 = vunpack.c.l.b16 %v93
    %v126 = vunpack.c.l.b16 %v94
    %v127 = vpack.c.b16 %v120, %v119
    %v128 = vpack.c.b16 %v122, %v121
    %v129 = vpack.c.b16 %v124, %v123
    %v130 = vpack.c.b16 %v126, %v125
    %v151 = vunpack.c.l.b16 %v95
    %v152 = vunpack.c.l.b16 %v96
    %v153 = vunpack.c.l.b16 %v97
    %v154 = vunpack.c.l.b16 %v98
    %v155 = vunpack.c.l.b16 %v99
    %v156 = vunpack.c.l.b16 %v100
    %v157 = vunpack.c.l.b16 %v101
    %v158 = vunpack.c.l.b16 %v102
    %v159 = vunpack.c.l.b16 %v103
    %v160 = vunpack.c.l.b16 %v104
    %v161 = vunpack.c.l.b16 %v105
    %v162 = vunpack.c.l.b16 %v106
    %v163 = vunpack.c.l.b16 %v107
    %v164 = vunpack.c.l.b16 %v108
    %v165 = vunpack.c.l.b16 %v109
    %v166 = vunpack.c.l.b16 %v110
    %v167 = vpack.c.b16 %v152, %v151
    %v168 = vpack.c.b16 %v154, %v153
    %v169 = vpack.c.b16 %v156, %v155
    %v170 = vpack.c.b16 %v158, %v157
    %v171 = vpack.c.b16 %v160, %v159
    %v172 = vpack.c.b16 %v162, %v161
    %v173 = vpack.c.b16 %v164, %v163
    %v174 = vpack.c.b16 %v166, %v165
    %183 = vmatprep.subr.bf16.mxu0 0
    %184 = vmatpush1.bf16.msra.mxu0 %v174
    %185 = vmatprep.subr.bf16.mxu0 0
    %186 = vmatpush1.bf16.msra.mxu0 %v173
    %187 = vmatprep.subr.bf16.mxu0 0
    %188 = vmatpush1.bf16.msra.mxu0 %v172
    %189 = vmatprep.subr.bf16.mxu0 0
    %190 = vmatpush1.bf16.msra.mxu0 %v171
    %191 = vmatprep.subr.bf16.mxu0 0
    %192 = vmatpush1.bf16.msra.mxu0 %v170
    %193 = vmatprep.subr.bf16.mxu0 0
    %194 = vmatpush1.bf16.msra.mxu0 %v169
    %195 = vmatprep.subr.bf16.mxu0 0
    %196 = vmatpush1.bf16.msra.mxu0 %v168
    %197 = vmatprep.subr.bf16.mxu0 0
    %198 = vmatpush1.bf16.msra.mxu0 %v167
    %199 = vmatprep.subr.bf16.mxu0 0
    %200 = vmatpush2.bf16.msra.mxu0 0
    %201 = vmatprep.subr.bf16.mxu0 0
    %202 = vmatpush2.bf16.msra.mxu0 0
    %203 = vmatprep.subr.bf16.mxu0 0
    %204 = vmatpush2.bf16.msra.mxu0 0
    %205 = vmatprep.subr.bf16.mxu0 0
    %206 = vmatpush2.bf16.msra.mxu0 0
    %207 = vmatprep.subr.bf16.mxu0 0
    %208 = vmatpush2.bf16.msra.mxu0 0
    %209 = vmatprep.subr.bf16.mxu0 0
    %210 = vmatpush2.bf16.msra.mxu0 0
    %211 = vmatprep.subr.bf16.mxu0 0
    %212 = vmatpush2.bf16.msra.mxu0 0
    %213 = vmatprep.subr.bf16.mxu0 0
    %214 = vmatpush2.bf16.msra.mxu0 0
    %215 = vmatprep.mubr.bf16.mxu0 0
    %216 = vmatmul.mubr.bf16.gmra.mxu0 %v127
    %v217 = vpop.f32.mrf.mxu0
    %v218 = vadd.f32 0.0, %v217
    %v219 = vpop.f32.mrf.mxu0
    %v220 = vpop.f32.mrf.mxu0
    %v221 = vadd.f32 0.0, %v220
    %v222 = vpop.f32.mrf.mxu0
    %223 = vmatprep.mubr.bf16.mxu0 0
    %224 = vmatmul.mubr.bf16.gmra.mxu0 %v128
    %v225 = vpop.f32.mrf.mxu0
    %v226 = vadd.f32 0.0, %v225
    %v227 = vpop.f32.mrf.mxu0
    %v228 = vpop.f32.mrf.mxu0
    %v229 = vadd.f32 0.0, %v228
    %v230 = vpop.f32.mrf.mxu0
    %231 = vmatprep.mubr.bf16.mxu0 0
    %232 = vmatmul.mubr.bf16.gmra.mxu0 %v129
    %v233 = vpop.f32.mrf.mxu0
    %v234 = vadd.f32 0.0, %v233
    %v235 = vpop.f32.mrf.mxu0
    %v236 = vpop.f32.mrf.mxu0
    %v237 = vadd.f32 0.0, %v236
    %v238 = vpop.f32.mrf.mxu0
    %239 = vmatprep.mubr.bf16.mxu0 0
    %240 = vmatmul.mubr.bf16.gmra.mxu0 %v130
    %v241 = vpop.f32.mrf.mxu0
    %v242 = vadd.f32 0.0, %v241
    %v243 = vpop.f32.mrf.mxu0
    %v244 = vpop.f32.mrf.mxu0
    %v245 = vadd.f32 0.0, %v244
    %v246 = vpop.f32.mrf.mxu0
    %247 = vdwg.mxu0
    %v248 = vpack.c.bf16 %v218, %v218
    %v249 = vpack.c.bf16 %v221, %v221
    %v250 = vpack.c.bf16 %v226, %v226
    %v251 = vpack.c.bf16 %v229, %v229
    %v252 = vpack.c.bf16 %v234, %v234
    %v253 = vpack.c.bf16 %v237, %v237
    %v254 = vpack.c.bf16 %v242, %v242
    %v255 = vpack.c.bf16 %v245, %v245
    %256 = vst [vmem:[#allocation4] sm:$0xf] %v248
    %257 = vst [vmem:[#allocation4 + $0x4] sm:$0xf] %v249
    %258 = vst [vmem:[#allocation4 + $0x8] sm:$0xf] %v250
    %259 = vst [vmem:[#allocation4 + $0xc] sm:$0xf] %v251
    %260 = vst [vmem:[#allocation4 + $0x10] sm:$0xf] %v252
    %261 = vst [vmem:[#allocation4 + $0x14] sm:$0xf] %v253
    %262 = vst [vmem:[#allocation4 + $0x18] sm:$0xf] %v254
    %263 = vst [vmem:[#allocation4 + $0x1c] sm:$0xf] %v255
    %v264 = vld [vmem:[%s3] sm:$0x1]
    %v265 = vlaneseq
    %v266 = vand.u32 %v265, 127
    %vm267 = vcmp.ge.s32.totalorder %v266, 64
    %vm268 = vcmp.lt.s32.totalorder %v266, 96
    %vm269 = vmand %vm267, %vm268
    %v270 = vld [vmem:[#allocation2] sm:$0xff]
    %v271 = vld [vmem:[#allocation3] sm:$0xff]
    %v272 = vld [vmem:[#allocation4] sm:$0xf]
    %v273 = vunpack.c.l.bf16 %v272
    %v274 = vpack.c.bf16 %v270, %v270
    %v275 = vld [vmem:[#allocation10] sm:$0xf]
    %v276 = vld [vmem:[#allocation10 + $0x4] sm:$0xf]
    %v277 = vld [vmem:[#allocation10 + $0x8] sm:$0xf]
    %v278 = vld [vmem:[#allocation10 + $0xc] sm:$0xf]
    %v283 = vunpack.c.l.b16 %v275
    %v284 = vunpack.c.l.b16 %v276
    %v285 = vunpack.c.l.b16 %v277
    %v286 = vunpack.c.l.b16 %v278
    %v287 = vpack.c.b16 %v284, %v283
    %v288 = vpack.c.b16 %v286, %v285
    %vm291 = vcmask 261120
    %v293 = vsel %vm291, %v274, 0
    %295 = vmatprep.subr.bf16.mxu0 0
    %296 = vmatpush1.bf16.msra.mxu0 0
    %297 = vmatprep.subr.bf16.mxu0 0
    %298 = vmatpush1.bf16.msra.mxu0 0
    %299 = vmatprep.subr.bf16.mxu0 0
    %300 = vmatpush1.bf16.msra.mxu0 0
    %301 = vmatprep.subr.bf16.mxu0 0
    %302 = vmatpush1.bf16.msra.mxu0 0
    %303 = vmatprep.subr.bf16.mxu0 0
    %304 = vmatpush1.bf16.msra.mxu0 0
    %305 = vmatprep.subr.bf16.mxu0 0
    %306 = vmatpush1.bf16.msra.mxu0 0
    %307 = vmatprep.subr.bf16.mxu0 0
    %308 = vmatpush1.bf16.msra.mxu0 %v288
    %309 = vmatprep.subr.bf16.mxu0 0
    %310 = vmatpush1.bf16.msra.mxu0 %v287
    %311 = vmatprep.subr.bf16.mxu0 0
    %312 = vmatpush2.bf16.msra.mxu0 0
    %313 = vmatprep.subr.bf16.mxu0 0
    %314 = vmatpush2.bf16.msra.mxu0 0
    %315 = vmatprep.subr.bf16.mxu0 0
    %316 = vmatpush2.bf16.msra.mxu0 0
    %317 = vmatprep.subr.bf16.mxu0 0
    %318 = vmatpush2.bf16.msra.mxu0 0
    %319 = vmatprep.subr.bf16.mxu0 0
    %320 = vmatpush2.bf16.msra.mxu0 0
    %321 = vmatprep.subr.bf16.mxu0 0
    %322 = vmatpush2.bf16.msra.mxu0 0
    %323 = vmatprep.subr.bf16.mxu0 0
    %324 = vmatpush2.bf16.msra.mxu0 0
    %325 = vmatprep.subr.bf16.mxu0 0
    %326 = vmatpush2.bf16.msra.mxu0 0
    %327 = vmatprep.mubr.bf16.mxu0 0
    %328 = vmatmul.mubr.bf16.gmra.mxu0 %v293
    %v329 = vpop.f32.mrf.mxu0
    %v330 = vadd.f32 0.0, %v329
    %v331 = vpop.f32.mrf.mxu0
    %v332 = vpop.f32.mrf.mxu0
    %v333 = vpop.f32.mrf.mxu0
    %334 = vdwg.mxu0
    %v335 = vadd.f32 %v273, %v330
    %v337 = vlaneseq
    %v338 = vshrl.u32 %v337, 7
    %v339 = vsub.s32 0, %v338
    %v340 = vrot.slane %v264, %v339
    %v342 = vadd.f32 %v335, %v340
    %v343 = vxor.u32 %v342, 2147483648
    %v344 = vmul.f32 %v343, 1.442695
    %v345 = vpow.pop %v344
    %v346 = vadd.f32 %v345, 1.0
    %v347 = vrcp.pop %v346
    %v348 = vmul.f32 1.0, %v347
    %v349 = vtanh.pop %v342
    %v350 = vsel %vm269, %v349, %v348
    %352 = vrot.lane.b32.xlu0 %v271, 32
    %v353 = vpop.permute.xlu0 %352
    %v355 = vmul.f32 %v350, %v353
    %357 = vrot.lane.b32.xlu0 %v350, 64
    %v358 = vpop.permute.xlu0 %357
    %v360 = vmul.f32 %v350, %v358
    %362 = vrot.lane.b32.xlu0 %v360, 32
    %v363 = vpop.permute.xlu0 %362
    %v365 = vadd.f32 %v355, %v363
    %v366 = vtanh.pop %v365
    %368 = vrot.lane.b32.xlu0 %v366, 64
    %v369 = vpop.permute.xlu0 %368
    %v371 = vmul.f32 %v350, %v369
    %s372 = scalar_lea.vmem [#allocation4], 4
    %v373 = vld [vmem:[%s372] sm:$0xf]
    %v374 = vunpack.c.l.bf16 %v373
    %v375 = vpack.c.bf16 %v371, %v371
    %377 = vrot.lane.b32.xlu0 %v375, 32
    %v378 = vpop.permute.xlu0 %377
    %v380 = vsel %vm291, %v378, 0
    %382 = vmatprep.subr.bf16.mxu0 0
    %383 = vmatpush1.bf16.msra.mxu0 0
    %384 = vmatprep.subr.bf16.mxu0 0
    %385 = vmatpush1.bf16.msra.mxu0 0
    %386 = vmatprep.subr.bf16.mxu0 0
    %387 = vmatpush1.bf16.msra.mxu0 0
    %388 = vmatprep.subr.bf16.mxu0 0
    %389 = vmatpush1.bf16.msra.mxu0 0
    %390 = vmatprep.subr.bf16.mxu0 0
    %391 = vmatpush1.bf16.msra.mxu0 0
    %392 = vmatprep.subr.bf16.mxu0 0
    %393 = vmatpush1.bf16.msra.mxu0 0
    %394 = vmatprep.subr.bf16.mxu0 0
    %395 = vmatpush1.bf16.msra.mxu0 %v288
    %396 = vmatprep.subr.bf16.mxu0 0
    %397 = vmatpush1.bf16.msra.mxu0 %v287
    %398 = vmatprep.subr.bf16.mxu0 0
    %399 = vmatpush2.bf16.msra.mxu0 0
    %400 = vmatprep.subr.bf16.mxu0 0
    %401 = vmatpush2.bf16.msra.mxu0 0
    %402 = vmatprep.subr.bf16.mxu0 0
    %403 = vmatpush2.bf16.msra.mxu0 0
    %404 = vmatprep.subr.bf16.mxu0 0
    %405 = vmatpush2.bf16.msra.mxu0 0
    %406 = vmatprep.subr.bf16.mxu0 0
    %407 = vmatpush2.bf16.msra.mxu0 0
    %408 = vmatprep.subr.bf16.mxu0 0
    %409 = vmatpush2.bf16.msra.mxu0 0
    %410 = vmatprep.subr.bf16.mxu0 0
    %411 = vmatpush2.bf16.msra.mxu0 0
    %412 = vmatprep.subr.bf16.mxu0 0
    %413 = vmatpush2.bf16.msra.mxu0 0
    %414 = vmatprep.mubr.bf16.mxu0 0
    %415 = vmatmul.mubr.bf16.gmra.mxu0 %v380
    %v416 = vpop.f32.mrf.mxu0
    %v417 = vadd.f32 0.0, %v416
    %v418 = vpop.f32.mrf.mxu0
    %v419 = vpop.f32.mrf.mxu0
    %v420 = vpop.f32.mrf.mxu0
    %421 = vdwg.mxu0
    %v422 = vadd.f32 %v374, %v417
    %v423 = vadd.f32 %v422, %v340
    %v424 = vxor.u32 %v423, 2147483648
    %v425 = vmul.f32 %v424, 1.442695
    %v426 = vpow.pop %v425
    %v427 = vadd.f32 %v426, 1.0
    %v428 = vrcp.pop %v427
    %v429 = vmul.f32 1.0, %v428
    %v430 = vtanh.pop %v423
    %v431 = vsel %vm269, %v430, %v429
    %v432 = vmul.f32 %v431, %v365
    %434 = vrot.lane.b32.xlu0 %v431, 64
    %v435 = vpop.permute.xlu0 %434
    %v437 = vmul.f32 %v431, %v435
    %439 = vrot.lane.b32.xlu0 %v437, 32
    %v440 = vpop.permute.xlu0 %439
    %v442 = vadd.f32 %v432, %v440
    %v443 = vtanh.pop %v442
    %445 = vrot.lane.b32.xlu0 %v443, 64
    %v446 = vpop.permute.xlu0 %445
    %v448 = vmul.f32 %v431, %v446
    %s449 = scalar_lea.vmem [#allocation4], 8
    %v450 = vld [vmem:[%s449] sm:$0xf]
    %v451 = vunpack.c.l.bf16 %v450
    %v452 = vpack.c.bf16 %v448, %v448
    %454 = vrot.lane.b32.xlu0 %v452, 32
    %v455 = vpop.permute.xlu0 %454
    %v457 = vsel %vm291, %v455, 0
    %459 = vmatprep.subr.bf16.mxu0 0
    %460 = vmatpush1.bf16.msra.mxu0 0
    %461 = vmatprep.subr.bf16.mxu0 0
    %462 = vmatpush1.bf16.msra.mxu0 0
    %463 = vmatprep.subr.bf16.mxu0 0
    %464 = vmatpush1.bf16.msra.mxu0 0
    %465 = vmatprep.subr.bf16.mxu0 0
    %466 = vmatpush1.bf16.msra.mxu0 0
    %467 = vmatprep.subr.bf16.mxu0 0
    %468 = vmatpush1.bf16.msra.mxu0 0
    %469 = vmatprep.subr.bf16.mxu0 0
    %470 = vmatpush1.bf16.msra.mxu0 0
    %471 = vmatprep.subr.bf16.mxu0 0
    %472 = vmatpush1.bf16.msra.mxu0 %v288
    %473 = vmatprep.subr.bf16.mxu0 0
    %474 = vmatpush1.bf16.msra.mxu0 %v287
    %475 = vmatprep.subr.bf16.mxu0 0
    %476 = vmatpush2.bf16.msra.mxu0 0
    %477 = vmatprep.subr.bf16.mxu0 0
    %478 = vmatpush2.bf16.msra.mxu0 0
    %479 = vmatprep.subr.bf16.mxu0 0
    %480 = vmatpush2.bf16.msra.mxu0 0
    %481 = vmatprep.subr.bf16.mxu0 0
    %482 = vmatpush2.bf16.msra.mxu0 0
    %483 = vmatprep.subr.bf16.mxu0 0
    %484 = vmatpush2.bf16.msra.mxu0 0
    %485 = vmatprep.subr.bf16.mxu0 0
    %486 = vmatpush2.bf16.msra.mxu0 0
    %487 = vmatprep.subr.bf16.mxu0 0
    %488 = vmatpush2.bf16.msra.mxu0 0
    %489 = vmatprep.subr.bf16.mxu0 0
    %490 = vmatpush2.bf16.msra.mxu0 0
    %491 = vmatprep.mubr.bf16.mxu0 0
    %492 = vmatmul.mubr.bf16.gmra.mxu0 %v457
    %v493 = vpop.f32.mrf.mxu0
    %v494 = vadd.f32 0.0, %v493
    %v495 = vpop.f32.mrf.mxu0
    %v496 = vpop.f32.mrf.mxu0
    %v497 = vpop.f32.mrf.mxu0
    %498 = vdwg.mxu0
    %v499 = vadd.f32 %v451, %v494
    %v500 = vadd.f32 %v499, %v340
    %v501 = vxor.u32 %v500, 2147483648
    %v502 = vmul.f32 %v501, 1.442695
    %v503 = vpow.pop %v502
    %v504 = vadd.f32 %v503, 1.0
    %v505 = vrcp.pop %v504
    %v506 = vmul.f32 1.0, %v505
    %v507 = vtanh.pop %v500
    %v508 = vsel %vm269, %v507, %v506
    %v509 = vmul.f32 %v508, %v442
    %511 = vrot.lane.b32.xlu0 %v508, 64
    %v512 = vpop.permute.xlu0 %511
    %v514 = vmul.f32 %v508, %v512
    %516 = vrot.lane.b32.xlu0 %v514, 32
    %v517 = vpop.permute.xlu0 %516
    %v519 = vadd.f32 %v509, %v517
    %v520 = vtanh.pop %v519
    %522 = vrot.lane.b32.xlu0 %v520, 64
    %v523 = vpop.permute.xlu0 %522
    %v525 = vmul.f32 %v508, %v523
    %s526 = scalar_lea.vmem [#allocation4], 12
    %v527 = vld [vmem:[%s526] sm:$0xf]
    %v528 = vunpack.c.l.bf16 %v527
    %v529 = vpack.c.bf16 %v525, %v525
    %531 = vrot.lane.b32.xlu0 %v529, 32
    %v532 = vpop.permute.xlu0 %531
    %v534 = vsel %vm291, %v532, 0
    %536 = vmatprep.subr.bf16.mxu0 0
    %537 = vmatpush1.bf16.msra.mxu0 0
    %538 = vmatprep.subr.bf16.mxu0 0
    %539 = vmatpush1.bf16.msra.mxu0 0
    %540 = vmatprep.subr.bf16.mxu0 0
    %541 = vmatpush1.bf16.msra.mxu0 0
    %542 = vmatprep.subr.bf16.mxu0 0
    %543 = vmatpush1.bf16.msra.mxu0 0
    %544 = vmatprep.subr.bf16.mxu0 0
    %545 = vmatpush1.bf16.msra.mxu0 0
    %546 = vmatprep.subr.bf16.mxu0 0
    %547 = vmatpush1.bf16.msra.mxu0 0
    %548 = vmatprep.subr.bf16.mxu0 0
    %549 = vmatpush1.bf16.msra.mxu0 %v288
    %550 = vmatprep.subr.bf16.mxu0 0
    %551 = vmatpush1.bf16.msra.mxu0 %v287
    %552 = vmatprep.subr.bf16.mxu0 0
    %553 = vmatpush2.bf16.msra.mxu0 0
    %554 = vmatprep.subr.bf16.mxu0 0
    %555 = vmatpush2.bf16.msra.mxu0 0
    %556 = vmatprep.subr.bf16.mxu0 0
    %557 = vmatpush2.bf16.msra.mxu0 0
    %558 = vmatprep.subr.bf16.mxu0 0
    %559 = vmatpush2.bf16.msra.mxu0 0
    %560 = vmatprep.subr.bf16.mxu0 0
    %561 = vmatpush2.bf16.msra.mxu0 0
    %562 = vmatprep.subr.bf16.mxu0 0
    %563 = vmatpush2.bf16.msra.mxu0 0
    %564 = vmatprep.subr.bf16.mxu0 0
    %565 = vmatpush2.bf16.msra.mxu0 0
    %566 = vmatprep.subr.bf16.mxu0 0
    %567 = vmatpush2.bf16.msra.mxu0 0
    %568 = vmatprep.mubr.bf16.mxu0 0
    %569 = vmatmul.mubr.bf16.gmra.mxu0 %v534
    %v570 = vpop.f32.mrf.mxu0
    %v571 = vadd.f32 0.0, %v570
    %v572 = vpop.f32.mrf.mxu0
    %v573 = vpop.f32.mrf.mxu0
    %v574 = vpop.f32.mrf.mxu0
    %575 = vdwg.mxu0
    %v576 = vadd.f32 %v528, %v571
    %v577 = vadd.f32 %v576, %v340
    %v578 = vxor.u32 %v577, 2147483648
    %v579 = vmul.f32 %v578, 1.442695
    %v580 = vpow.pop %v579
    %v581 = vadd.f32 %v580, 1.0
    %v582 = vrcp.pop %v581
    %v583 = vmul.f32 1.0, %v582
    %v584 = vtanh.pop %v577
    %v585 = vsel %vm269, %v584, %v583
    %v586 = vmul.f32 %v585, %v519
    %588 = vrot.lane.b32.xlu0 %v585, 64
    %v589 = vpop.permute.xlu0 %588
    %v591 = vmul.f32 %v585, %v589
    %593 = vrot.lane.b32.xlu0 %v591, 32
    %v594 = vpop.permute.xlu0 %593
    %v596 = vadd.f32 %v586, %v594
    %v597 = vtanh.pop %v596
    %599 = vrot.lane.b32.xlu0 %v597, 64
    %v600 = vpop.permute.xlu0 %599
    %v602 = vmul.f32 %v585, %v600
    %s603 = scalar_lea.vmem [#allocation4], 16
    %v604 = vld [vmem:[%s603] sm:$0xf]
    %v605 = vunpack.c.l.bf16 %v604
    %v606 = vpack.c.bf16 %v602, %v602
    %608 = vrot.lane.b32.xlu0 %v606, 32
    %v609 = vpop.permute.xlu0 %608
    %v611 = vsel %vm291, %v609, 0
    %613 = vmatprep.subr.bf16.mxu0 0
    %614 = vmatpush1.bf16.msra.mxu0 0
    %615 = vmatprep.subr.bf16.mxu0 0
    %616 = vmatpush1.bf16.msra.mxu0 0
    %617 = vmatprep.subr.bf16.mxu0 0
    %618 = vmatpush1.bf16.msra.mxu0 0
    %619 = vmatprep.subr.bf16.mxu0 0
    %620 = vmatpush1.bf16.msra.mxu0 0
    %621 = vmatprep.subr.bf16.mxu0 0
    %622 = vmatpush1.bf16.msra.mxu0 0
    %623 = vmatprep.subr.bf16.mxu0 0
    %624 = vmatpush1.bf16.msra.mxu0 0
    %625 = vmatprep.subr.bf16.mxu0 0
    %626 = vmatpush1.bf16.msra.mxu0 %v288
    %627 = vmatprep.subr.bf16.mxu0 0
    %628 = vmatpush1.bf16.msra.mxu0 %v287
    %629 = vmatprep.subr.bf16.mxu0 0
    %630 = vmatpush2.bf16.msra.mxu0 0
    %631 = vmatprep.subr.bf16.mxu0 0
    %632 = vmatpush2.bf16.msra.mxu0 0
    %633 = vmatprep.subr.bf16.mxu0 0
    %634 = vmatpush2.bf16.msra.mxu0 0
    %635 = vmatprep.subr.bf16.mxu0 0
    %636 = vmatpush2.bf16.msra.mxu0 0
    %637 = vmatprep.subr.bf16.mxu0 0
    %638 = vmatpush2.bf16.msra.mxu0 0
    %639 = vmatprep.subr.bf16.mxu0 0
    %640 = vmatpush2.bf16.msra.mxu0 0
    %641 = vmatprep.subr.bf16.mxu0 0
    %642 = vmatpush2.bf16.msra.mxu0 0
    %643 = vmatprep.subr.bf16.mxu0 0
    %644 = vmatpush2.bf16.msra.mxu0 0
    %645 = vmatprep.mubr.bf16.mxu0 0
    %646 = vmatmul.mubr.bf16.gmra.mxu0 %v611
    %v647 = vpop.f32.mrf.mxu0
    %v648 = vadd.f32 0.0, %v647
    %v649 = vpop.f32.mrf.mxu0
    %v650 = vpop.f32.mrf.mxu0
    %v651 = vpop.f32.mrf.mxu0
    %652 = vdwg.mxu0
    %v653 = vadd.f32 %v605, %v648
    %v654 = vadd.f32 %v653, %v340
    %v655 = vxor.u32 %v654, 2147483648
    %v656 = vmul.f32 %v655, 1.442695
    %v657 = vpow.pop %v656
    %v658 = vadd.f32 %v657, 1.0
    %v659 = vrcp.pop %v658
    %v660 = vmul.f32 1.0, %v659
    %v661 = vtanh.pop %v654
    %v662 = vsel %vm269, %v661, %v660
    %v663 = vmul.f32 %v662, %v596
    %665 = vrot.lane.b32.xlu0 %v662, 64
    %v666 = vpop.permute.xlu0 %665
    %v668 = vmul.f32 %v662, %v666
    %670 = vrot.lane.b32.xlu0 %v668, 32
    %v671 = vpop.permute.xlu0 %670
    %v673 = vadd.f32 %v663, %v671
    %v674 = vtanh.pop %v673
    %676 = vrot.lane.b32.xlu0 %v674, 64
    %v677 = vpop.permute.xlu0 %676
    %v679 = vmul.f32 %v662, %v677
    %s680 = scalar_lea.vmem [#allocation4], 20
    %v681 = vld [vmem:[%s680] sm:$0xf]
    %v682 = vunpack.c.l.bf16 %v681
    %v683 = vpack.c.bf16 %v679, %v679
    %685 = vrot.lane.b32.xlu0 %v683, 32
    %v686 = vpop.permute.xlu0 %685
    %v688 = vsel %vm291, %v686, 0
    %690 = vmatprep.subr.bf16.mxu0 0
    %691 = vmatpush1.bf16.msra.mxu0 0
    %692 = vmatprep.subr.bf16.mxu0 0
    %693 = vmatpush1.bf16.msra.mxu0 0
    %694 = vmatprep.subr.bf16.mxu0 0
    %695 = vmatpush1.bf16.msra.mxu0 0
    %696 = vmatprep.subr.bf16.mxu0 0
    %697 = vmatpush1.bf16.msra.mxu0 0
    %698 = vmatprep.subr.bf16.mxu0 0
    %699 = vmatpush1.bf16.msra.mxu0 0
    %700 = vmatprep.subr.bf16.mxu0 0
    %701 = vmatpush1.bf16.msra.mxu0 0
    %702 = vmatprep.subr.bf16.mxu0 0
    %703 = vmatpush1.bf16.msra.mxu0 %v288
    %704 = vmatprep.subr.bf16.mxu0 0
    %705 = vmatpush1.bf16.msra.mxu0 %v287
    %706 = vmatprep.subr.bf16.mxu0 0
    %707 = vmatpush2.bf16.msra.mxu0 0
    %708 = vmatprep.subr.bf16.mxu0 0
    %709 = vmatpush2.bf16.msra.mxu0 0
    %710 = vmatprep.subr.bf16.mxu0 0
    %711 = vmatpush2.bf16.msra.mxu0 0
    %712 = vmatprep.subr.bf16.mxu0 0
    %713 = vmatpush2.bf16.msra.mxu0 0
    %714 = vmatprep.subr.bf16.mxu0 0
    %715 = vmatpush2.bf16.msra.mxu0 0
    %716 = vmatprep.subr.bf16.mxu0 0
    %717 = vmatpush2.bf16.msra.mxu0 0
    %718 = vmatprep.subr.bf16.mxu0 0
    %719 = vmatpush2.bf16.msra.mxu0 0
    %720 = vmatprep.subr.bf16.mxu0 0
    %721 = vmatpush2.bf16.msra.mxu0 0
    %722 = vmatprep.mubr.bf16.mxu0 0
    %723 = vmatmul.mubr.bf16.gmra.mxu0 %v688
    %v724 = vpop.f32.mrf.mxu0
    %v725 = vadd.f32 0.0, %v724
    %v726 = vpop.f32.mrf.mxu0
    %v727 = vpop.f32.mrf.mxu0
    %v728 = vpop.f32.mrf.mxu0
    %729 = vdwg.mxu0
    %v730 = vadd.f32 %v682, %v725
    %v731 = vadd.f32 %v730, %v340
    %v732 = vxor.u32 %v731, 2147483648
    %v733 = vmul.f32 %v732, 1.442695
    %v734 = vpow.pop %v733
    %v735 = vadd.f32 %v734, 1.0
    %v736 = vrcp.pop %v735
    %v737 = vmul.f32 1.0, %v736
    %v738 = vtanh.pop %v731
    %v739 = vsel %vm269, %v738, %v737
    %v740 = vmul.f32 %v739, %v673
    %742 = vrot.lane.b32.xlu0 %v739, 64
    %v743 = vpop.permute.xlu0 %742
    %v745 = vmul.f32 %v739, %v743
    %747 = vrot.lane.b32.xlu0 %v745, 32
    %v748 = vpop.permute.xlu0 %747
    %v750 = vadd.f32 %v740, %v748
    %v751 = vtanh.pop %v750
    %753 = vrot.lane.b32.xlu0 %v751, 64
    %v754 = vpop.permute.xlu0 %753
    %v756 = vmul.f32 %v739, %v754
    %s757 = scalar_lea.vmem [#allocation4], 24
    %v758 = vld [vmem:[%s757] sm:$0xf]
    %v759 = vunpack.c.l.bf16 %v758
    %v760 = vpack.c.bf16 %v756, %v756
    %762 = vrot.lane.b32.xlu0 %v760, 32
    %v763 = vpop.permute.xlu0 %762
    %v765 = vsel %vm291, %v763, 0
    %767 = vmatprep.subr.bf16.mxu0 0
    %768 = vmatpush1.bf16.msra.mxu0 0
    %769 = vmatprep.subr.bf16.mxu0 0
    %770 = vmatpush1.bf16.msra.mxu0 0
    %771 = vmatprep.subr.bf16.mxu0 0
    %772 = vmatpush1.bf16.msra.mxu0 0
    %773 = vmatprep.subr.bf16.mxu0 0
    %774 = vmatpush1.bf16.msra.mxu0 0
    %775 = vmatprep.subr.bf16.mxu0 0
    %776 = vmatpush1.bf16.msra.mxu0 0
    %777 = vmatprep.subr.bf16.mxu0 0
    %778 = vmatpush1.bf16.msra.mxu0 0
    %779 = vmatprep.subr.bf16.mxu0 0
    %780 = vmatpush1.bf16.msra.mxu0 %v288
    %781 = vmatprep.subr.bf16.mxu0 0
    %782 = vmatpush1.bf16.msra.mxu0 %v287
    %783 = vmatprep.subr.bf16.mxu0 0
    %784 = vmatpush2.bf16.msra.mxu0 0
    %785 = vmatprep.subr.bf16.mxu0 0
    %786 = vmatpush2.bf16.msra.mxu0 0
    %787 = vmatprep.subr.bf16.mxu0 0
    %788 = vmatpush2.bf16.msra.mxu0 0
    %789 = vmatprep.subr.bf16.mxu0 0
    %790 = vmatpush2.bf16.msra.mxu0 0
    %791 = vmatprep.subr.bf16.mxu0 0
    %792 = vmatpush2.bf16.msra.mxu0 0
    %793 = vmatprep.subr.bf16.mxu0 0
    %794 = vmatpush2.bf16.msra.mxu0 0
    %795 = vmatprep.subr.bf16.mxu0 0
    %796 = vmatpush2.bf16.msra.mxu0 0
    %797 = vmatprep.subr.bf16.mxu0 0
    %798 = vmatpush2.bf16.msra.mxu0 0
    %799 = vmatprep.mubr.bf16.mxu0 0
    %800 = vmatmul.mubr.bf16.gmra.mxu0 %v765
    %v801 = vpop.f32.mrf.mxu0
    %v802 = vadd.f32 0.0, %v801
    %v803 = vpop.f32.mrf.mxu0
    %v804 = vpop.f32.mrf.mxu0
    %v805 = vpop.f32.mrf.mxu0
    %806 = vdwg.mxu0
    %v807 = vadd.f32 %v759, %v802
    %v808 = vadd.f32 %v807, %v340
    %v809 = vxor.u32 %v808, 2147483648
    %v810 = vmul.f32 %v809, 1.442695
    %v811 = vpow.pop %v810
    %v812 = vadd.f32 %v811, 1.0
    %v813 = vrcp.pop %v812
    %v814 = vmul.f32 1.0, %v813
    %v815 = vtanh.pop %v808
    %v816 = vsel %vm269, %v815, %v814
    %v817 = vmul.f32 %v816, %v750
    %819 = vrot.lane.b32.xlu0 %v816, 64
    %v820 = vpop.permute.xlu0 %819
    %v822 = vmul.f32 %v816, %v820
    %824 = vrot.lane.b32.xlu0 %v822, 32
    %v825 = vpop.permute.xlu0 %824
    %v827 = vadd.f32 %v817, %v825
    %v828 = vtanh.pop %v827
    %830 = vrot.lane.b32.xlu0 %v828, 64
    %v831 = vpop.permute.xlu0 %830
    %v833 = vmul.f32 %v816, %v831
    %s834 = scalar_lea.vmem [#allocation4], 28
    %v835 = vld [vmem:[%s834] sm:$0xf]
    %v836 = vunpack.c.l.bf16 %v835
    %v837 = vpack.c.bf16 %v833, %v833
    %839 = vrot.lane.b32.xlu0 %v837, 32
    %v840 = vpop.permute.xlu0 %839
    %v842 = vsel %vm291, %v840, 0
    %844 = vmatprep.subr.bf16.mxu0 0
    %845 = vmatpush1.bf16.msra.mxu0 0
    %846 = vmatprep.subr.bf16.mxu0 0
    %847 = vmatpush1.bf16.msra.mxu0 0
    %848 = vmatprep.subr.bf16.mxu0 0
    %849 = vmatpush1.bf16.msra.mxu0 0
    %850 = vmatprep.subr.bf16.mxu0 0
    %851 = vmatpush1.bf16.msra.mxu0 0
    %852 = vmatprep.subr.bf16.mxu0 0
    %853 = vmatpush1.bf16.msra.mxu0 0
    %854 = vmatprep.subr.bf16.mxu0 0
    %855 = vmatpush1.bf16.msra.mxu0 0
    %856 = vmatprep.subr.bf16.mxu0 0
    %857 = vmatpush1.bf16.msra.mxu0 %v288
    %858 = vmatprep.subr.bf16.mxu0 0
    %859 = vmatpush1.bf16.msra.mxu0 %v287
    %860 = vmatprep.subr.bf16.mxu0 0
    %861 = vmatpush2.bf16.msra.mxu0 0
    %862 = vmatprep.subr.bf16.mxu0 0
    %863 = vmatpush2.bf16.msra.mxu0 0
    %864 = vmatprep.subr.bf16.mxu0 0
    %865 = vmatpush2.bf16.msra.mxu0 0
    %866 = vmatprep.subr.bf16.mxu0 0
    %867 = vmatpush2.bf16.msra.mxu0 0
    %868 = vmatprep.subr.bf16.mxu0 0
    %869 = vmatpush2.bf16.msra.mxu0 0
    %870 = vmatprep.subr.bf16.mxu0 0
    %871 = vmatpush2.bf16.msra.mxu0 0
    %872 = vmatprep.subr.bf16.mxu0 0
    %873 = vmatpush2.bf16.msra.mxu0 0
    %874 = vmatprep.subr.bf16.mxu0 0
    %875 = vmatpush2.bf16.msra.mxu0 0
    %876 = vmatprep.mubr.bf16.mxu0 0
    %877 = vmatmul.mubr.bf16.gmra.mxu0 %v842
    %v878 = vpop.f32.mrf.mxu0
    %v879 = vadd.f32 0.0, %v878
    %v880 = vpop.f32.mrf.mxu0
    %v881 = vpop.f32.mrf.mxu0
    %v882 = vpop.f32.mrf.mxu0
    %883 = vdwg.mxu0
    %v884 = vadd.f32 %v836, %v879
    %v885 = vadd.f32 %v884, %v340
    %v886 = vxor.u32 %v885, 2147483648
    %v887 = vmul.f32 %v886, 1.442695
    %v888 = vpow.pop %v887
    %v889 = vadd.f32 %v888, 1.0
    %v890 = vrcp.pop %v889
    %v891 = vmul.f32 1.0, %v890
    %v892 = vtanh.pop %v885
    %v893 = vsel %vm269, %v892, %v891
    %v894 = vmul.f32 %v893, %v827
    %896 = vrot.lane.b32.xlu0 %v893, 64
    %v897 = vpop.permute.xlu0 %896
    %v899 = vmul.f32 %v893, %v897
    %901 = vrot.lane.b32.xlu0 %v899, 32
    %v902 = vpop.permute.xlu0 %901
    %v904 = vadd.f32 %v894, %v902
    %v905 = vtanh.pop %v904
    %907 = vrot.lane.b32.xlu0 %v905, 64
    %v908 = vpop.permute.xlu0 %907
    %v910 = vmul.f32 %v893, %v908
    %912 = vrot.lane.b32.xlu0 %v910, 32
    %v913 = vpop.permute.xlu0 %912
    %915 = vst.msk [vmem:[#allocation2] sm:$0xff] %vm291, %v913
    %917 = vrot.lane.b32.xlu0 %v904, 96
    %v918 = vpop.permute.xlu0 %917
    %920 = vst.msk [vmem:[#allocation3] sm:$0xff] %vm291, %v918
    // Predicated region
    $region46: #{tpu_custom_call.1} parent=1 // pred_check
      %p921 = pneg %p80
    $region47: #{tpu_custom_call.1} parent=1 // pred_check_branch
      %923 = sbr.rel (%p921) target = $region49
    $region48: #{tpu_custom_call.1} parent=1 // pred_region
      %v924 = vpack.c.bf16 %v910, %v910
      %v925 = vld [vmem:[#allocation11] sm:$0xf]
      %v926 = vld [vmem:[#allocation11 + $0x4] sm:$0xf]
      %v927 = vld [vmem:[#allocation11 + $0x8] sm:$0xf]
      %v928 = vld [vmem:[#allocation11 + $0xc] sm:$0xf]
      %v929 = vld [vmem:[%s5] sm:$0x1]
      %v931 = vlaneseq
      %v932 = vshrl.u32 %v931, 7
      %v933 = vsub.s32 0, %v932
      %v934 = vrot.slane %v929, %v933
      %937 = vrot.lane.b32.xlu0 %v924, 32
      %v938 = vpop.permute.xlu0 %937
      %v943 = vunpack.c.l.b16 %v925
      %v944 = vunpack.c.l.b16 %v926
      %v945 = vunpack.c.l.b16 %v927
      %v946 = vunpack.c.l.b16 %v928
      %v947 = vpack.c.b16 %v944, %v943
      %v948 = vpack.c.b16 %v946, %v945
      %v952 = vsel %vm291, %v938, 0
      %954 = vmatprep.subr.bf16.mxu0 0
      %955 = vmatpush1.bf16.msra.mxu0 0
      %956 = vmatprep.subr.bf16.mxu0 0
      %957 = vmatpush1.bf16.msra.mxu0 0
      %958 = vmatprep.subr.bf16.mxu0 0
      %959 = vmatpush1.bf16.msra.mxu0 0
      %960 = vmatprep.subr.bf16.mxu0 0
      %961 = vmatpush1.bf16.msra.mxu0 0
      %962 = vmatprep.subr.bf16.mxu0 0
      %963 = vmatpush1.bf16.msra.mxu0 0
      %964 = vmatprep.subr.bf16.mxu0 0
      %965 = vmatpush1.bf16.msra.mxu0 0
      %966 = vmatprep.subr.bf16.mxu0 0
      %967 = vmatpush1.bf16.msra.mxu0 %v948
      %968 = vmatprep.subr.bf16.mxu0 0
      %969 = vmatpush1.bf16.msra.mxu0 %v947
      %970 = vmatprep.subr.bf16.mxu0 0
      %971 = vmatpush2.bf16.msra.mxu0 0
      %972 = vmatprep.subr.bf16.mxu0 0
      %973 = vmatpush2.bf16.msra.mxu0 0
      %974 = vmatprep.subr.bf16.mxu0 0
      %975 = vmatpush2.bf16.msra.mxu0 0
      %976 = vmatprep.subr.bf16.mxu0 0
      %977 = vmatpush2.bf16.msra.mxu0 0
      %978 = vmatprep.subr.bf16.mxu0 0
      %979 = vmatpush2.bf16.msra.mxu0 0
      %980 = vmatprep.subr.bf16.mxu0 0
      %981 = vmatpush2.bf16.msra.mxu0 0
      %982 = vmatprep.subr.bf16.mxu0 0
      %983 = vmatpush2.bf16.msra.mxu0 0
      %984 = vmatprep.subr.bf16.mxu0 0
      %985 = vmatpush2.bf16.msra.mxu0 0
      %986 = vmatprep.mubr.bf16.mxu0 0
      %987 = vmatmul.mubr.bf16.gmra.mxu0 %v952
      %v988 = vpop.f32.mrf.mxu0
      %v989 = vadd.f32 %v934, %v988
      %v990 = vpop.f32.mrf.mxu0
      %v991 = vpop.f32.mrf.mxu0
      %v992 = vpop.f32.mrf.mxu0
      %993 = vdwg.mxu0
      %994 = vmax.xlane.f32.xlu0 %v989
      %v995 = vpop.xlane.xlu0 %994
      %v996 = vsub.f32 %v989, %v995
      %v997 = vmul.f32 %v996, 1.442695
      %v998 = vpow.pop %v997
      %999 = vadd.xlane.f32.xlu0 %v998
      %v1000 = vpop.xlane.xlu0 %999
      %v1001 = vlog2.pop %v1000
      %v1002 = vmul.f32 %v1001, 0.6931472
      %v1003 = vadd.f32 %v995, %v1002
      %v1004 = vsub.f32 %v989, %v1003
      %1005 = vst [vmem:[#allocation13] sm:$0xff] %v1004
    $region49: #{tpu_custom_call.1} parent=1 // pred_fallthru
      _
    // Predicated region
    $region50: #{tpu_custom_call.1} parent=1 // pred_check
      _
    $region51: #{tpu_custom_call.1} parent=1 // pred_check_branch
      %1007 = sbr.rel (0) target = $region53
    $region52: #{tpu_custom_call.1} parent=1 // pred_region
      %s1009 = ssub.s32 128, 128
      %1010 = vsyncadd [#allocation7], %s1009
      %s1012 = sshll.u32 [#allocation13], 4
      %s1013 = int_to_ptr.vmem [resolvable:$true] %s1012
      %1015 = dma.vmem_to_hbm [thread:$0]  %s1013, 128, %s6, [#allocation7]
    $region53: #{tpu_custom_call.1} parent=1 // pred_fallthru
      _
    // Predicated region
    $region54: #{tpu_custom_call.1} parent=1 // pred_check
      _
    $region55: #{tpu_custom_call.1} parent=1 // pred_check_branch
      %1017 = sbr.rel (0) target = $region57
    $region56: #{tpu_custom_call.1} parent=1 // pred_region
      %1018 = dma.done [#allocation7], 128
    $region57: #{tpu_custom_call.1} parent=1 // pred_fallthru
      _
    %1019 = vsyncpa [#allocation6], 1
    %1020 = vsyncpa [#allocation9], 1
    %1021 = vsyncpa [#allocation12], 1
    %1022 = vsyncpa [#allocation7], 1

</llo_original>
